<compile_context>
chip_gen: v7x
topology: tpu7x:2x2x1
jax: 0.10.0
libtpu: 0.0.40
codegen_flags: <defaults>
</compile_context>

<pallas_src>
import jax
import jax.numpy as jnp
from jax.experimental import pallas as pl
from jax.experimental.pallas import tpu as pltpu


# ----------------------------------------------------------------------------
# Kernel
# ----------------------------------------------------------------------------
def _mot_kernel(has_ref, hom_ref, tid_ref, x_ref, w_ref, b_ref, o_ref, acc_ref):
    """grid = (dout_tiles, token_tiles).

    has_ref : SMEM (M, nt) int32  -- 1 iff modality m occurs in token tile i
    hom_ref : SMEM (nt,)  int32   -- m if tile i is homogeneous modality m, else -1
    tid_ref : VMEM (TM, 1) int32  -- per-token modality id (-1 for pad rows)
    x_ref   : VMEM (TM, D)        -- token activations
    w_ref   : VMEM (M, D, DT)     -- all modality weights (VMEM resident per j)
    b_ref   : VMEM (M, 1, DT) f32 -- biases
    o_ref   : VMEM (TM, DT)       -- output tile (written exactly once)
    acc_ref : VMEM (TM, DT) f32   -- scratch accumulator (mixed tiles only)
    """
    i = pl.program_id(1)                 # token-tile index
    M = w_ref.shape[0]
    x = x_ref[...]
    hom = hom_ref[i]

    # ---- fast path: tile contains exactly one modality (and no invalid rows):
    #      single matmul, direct store, no zero-init, no select.
    for m in range(M):
        @pl.when(hom == m)
        def _(m=m):
            y = jnp.dot(x, w_ref[m], preferred_element_type=jnp.float32) + b_ref[m]
            o_ref[...] = y.astype(o_ref.dtype)

    # ---- mixed / empty / partially-valid tile: accumulate in f32 scratch,
    #      store o_ref once at the end.  Absent modalities are skipped.
    @pl.when(hom < 0)
    def _():
        tid = tid_ref[...]
        acc_ref[...] = jnp.zeros_like(acc_ref)
        for m in range(M):
            @pl.when(has_ref[m, i] != 0)
            def _(m=m):
                y = jnp.dot(x, w_ref[m],
                            preferred_element_type=jnp.float32) + b_ref[m]
                # disjoint masks -> select (rows matching nothing stay zero)
                acc_ref[...] = jnp.where(tid == m, y, acc_ref[...])
        o_ref[...] = acc_ref[...].astype(o_ref.dtype)


# ----------------------------------------------------------------------------
# Helpers
# ----------------------------------------------------------------------------
def _round_up(x, n):
    return ((x + n - 1) // n) * n


def _vmem_capacity_bytes():
    """Physical VMEM of the current chip; conservative 64 MiB fallback."""
    try:
        info = pltpu.get_tpu_info()
        cap = getattr(info, "vmem_capacity_bytes", None)
        if cap:
            return int(cap)
    except Exception:
        pass
    return 64 << 20


def _pick_dout_tile(M, D, Dok, token_tile, *, w_itemsize, x_itemsize, o_itemsize,
                    w_buffers, budget_bytes):
    """Largest multiple-of-128 divisor of Dok whose working set fits budget."""
    best = 128
    for dt in range(128, Dok + 1, 128):
        if Dok % dt:
            continue
        need = (w_buffers * M * D * dt * w_itemsize      # weight slab
                + 2 * M * dt * 4                          # f32 bias
                + 2 * token_tile * D * x_itemsize         # x tile (double buf)
                + 2 * token_tile * dt * o_itemsize        # out tile (double buf)
                + token_tile * dt * 4                      # f32 acc scratch
                + 2 * token_tile * 4)                      # tid tile
        if need <= budget_bytes:
            best = dt
    return best


def prepare_mot_params(weights, biases, compute_dtype=jnp.bfloat16):
    """Hoisted, once-per-model preparation of the nn.Linear parameters.

    weights: (M, Dout, D)  (PyTorch nn.Linear layout); biases: (M, Dout).
    Returns (w_prep (M, D, Dok), b_prep (M, 1, Dok) f32, out_dim) where
    Dok = Dout rounded up to 128 only if needed for lane-dense tiles.
    """
    M, Dout, D = weights.shape
    Dok = Dout if Dout % 128 == 0 else _round_up(Dout, 128)
    w = jnp.transpose(weights, (0, 2, 1))                       # (M, D, Dout)
    b = biases
    if Dok != Dout:
        w = jnp.pad(w, ((0, 0), (0, 0), (0, Dok - Dout)))
        b = jnp.pad(b, ((0, 0), (0, Dok - Dout)))
    if compute_dtype is not None:
        w = w.astype(compute_dtype)
    b = b.reshape(M, 1, Dok).astype(jnp.float32)
    return w, b, Dout


def mot_forward(hidden_states, type_ids, w_prep, b_prep, out_dim, *,
                token_tile=256, dout_tile=None, sort_by_modality=False,
                weight_buffers=2, vmem_limit_bytes=None, vmem_budget_bytes=None):
    """hidden_states: (B, S, D); type_ids: (B, S) int; returns (B, S, out_dim).

    weight_buffers=1 single-buffers the (constant-index) weight slab
    (recommended on v7x's 64 MiB VMEM); default 2 keeps standard pipelining.
    """
    B, S, D = hidden_states.shape
    M, Dw, Dok = w_prep.shape
    assert Dw == D, "prepared weights do not match hidden dim"
    out_dtype = hidden_states.dtype
    N = B * S

    x = hidden_states.reshape(N, D)
    if jnp.issubdtype(w_prep.dtype, jnp.floating) and x.dtype != w_prep.dtype:
        x = x.astype(w_prep.dtype)                 # match compute dtype (bf16 default)
    tid = type_ids.reshape(N).astype(jnp.int32)

    if sort_by_modality:
        # Grouped-matmul approximation: contiguous modalities -> fast path.
        perm = jnp.argsort(tid)
        x = jnp.take(x, perm, axis=0)
        tid = jnp.take(tid, perm, axis=0)

    tt = min(token_tile, N)                        # full-dim block if N is tiny
    nt = pl.cdiv(N, tt)
    Np = nt * tt
    tid_pad = tid if Np == N else jnp.pad(tid, (0, Np - N), constant_values=-1)
    tid2 = tid_pad.reshape(Np, 1)

    # Per-tile modality tables (scalar-prefetched into SMEM).
    ids = jnp.arange(M, dtype=jnp.int32)
    tiles = tid_pad.reshape(nt, tt)
    eq = tiles[None, :, :] == ids[:, None, None]                 # (M, nt, tt)
    has = eq.any(-1).astype(jnp.int32)                           # (M, nt)
    allm = eq.all(-1)                                            # (M, nt)
    hom = jnp.where(allm.any(0), jnp.argmax(allm, axis=0).astype(jnp.int32),
                    jnp.int32(-1)).astype(jnp.int32)             # (nt,)

    # Generation-aware VMEM budget (v5e/v6e: ~96 MiB, v7x: ~48 MiB).
    cap = _vmem_capacity_bytes()
    if vmem_limit_bytes is None:
        vmem_limit_bytes = int(cap * 0.75)
    if vmem_budget_bytes is None:
        vmem_budget_bytes = max(vmem_limit_bytes - (8 << 20), 8 << 20)

    if dout_tile is None:
        dout_tile = _pick_dout_tile(
            M, D, Dok, tt,
            w_itemsize=jnp.dtype(w_prep.dtype).itemsize,
            x_itemsize=jnp.dtype(x.dtype).itemsize,
            o_itemsize=jnp.dtype(out_dtype).itemsize,
            w_buffers=weight_buffers, budget_bytes=vmem_budget_bytes)
    assert Dok % dout_tile == 0 and dout_tile % 128 == 0
    nd = Dok // dout_tile

    w_spec_kw = dict(pipeline_mode=pl.Buffered(1)) if weight_buffers == 1 else {}
    # dout outer so the weight slab stays VMEM-resident across the token sweep;
    # when nd >= 2 mark dout "parallel" so multi-TC chips split dout, not tokens.
    dims = ("parallel", "arbitrary") if nd >= 2 else ("arbitrary", "parallel")

    out = pl.pallas_call(
        _mot_kernel,
        out_shape=jax.ShapeDtypeStruct((N, Dok), out_dtype),
        grid_spec=pltpu.PrefetchScalarGridSpec(
            num_scalar_prefetch=2,
            grid=(nd, nt),                               # dout outer, tokens inner
            in_specs=[
                pl.BlockSpec((tt, 1), lambda j, i, has, hom: (i, 0)),       # tid
                pl.BlockSpec((tt, D), lambda j, i, has, hom: (i, 0)),       # x
                pl.BlockSpec((M, D, dout_tile),
                             lambda j, i, has, hom: (0, 0, j), **w_spec_kw),  # W
                pl.BlockSpec((M, 1, dout_tile),
                             lambda j, i, has, hom: (0, 0, j), **w_spec_kw),  # b
            ],
            out_specs=pl.BlockSpec((tt, dout_tile), lambda j, i, has, hom: (i, j)),
            scratch_shapes=[pltpu.VMEM((tt, dout_tile), jnp.float32)],
        ),
        compiler_params=pltpu.CompilerParams(
            dimension_semantics=dims,
            vmem_limit_bytes=vmem_limit_bytes),
    )(has, hom, tid2, x, w_prep, b_prep)

    if Dok != out_dim:                 # only slice when Dout actually padded
        out = out[:, :out_dim]
    if sort_by_modality:
        inv = jnp.argsort(perm)
        out = jnp.take(out, inv, axis=0)
    return out.reshape(B, S, out_dim)


# ----------------------------------------------------------------------------
# Pure-JAX reference of MoTBase.apply_module (dense masked form)
# ----------------------------------------------------------------------------
def mot_reference(hidden_states, type_ids, weights, biases):
    M, Dout, _ = weights.shape
    out = jnp.zeros(hidden_states.shape[:-1] + (Dout,), hidden_states.dtype)
    for m in range(M):
        y = jnp.einsum("bsd,od->bso", hidden_states, weights[m],
                       precision=jax.lax.Precision.HIGHEST) + biases[m]
        out = jnp.where((type_ids == m)[..., None], y.astype(out.dtype), out)
    return out


# ----------------------------------------------------------------------------
# Demo / self-test
# ----------------------------------------------------------------------------
if __name__ == "__main__":
    key = jax.random.PRNGKey(0)
    ok = True

    # ---- shared params: M=3 modalities, D=128 -> Dout=256 ------------------
    B, S, D, Dout, M = 2, 256, 128, 256, 3
    kx, kw, kb = jax.random.split(key, 3)
    x = jax.random.normal(kx, (B, S, D), dtype=jnp.float32)
    w = jax.random.normal(kw, (M, Dout, D), dtype=jnp.float32) * 0.05
    b = jax.random.normal(kb, (M, Dout), dtype=jnp.float32) * 0.01

    # modality-contiguous stream: batch0 = [mod 0 | mod 2], batch1 = mod 1
    t_row0 = jnp.concatenate([jnp.zeros((S // 2,), jnp.int32),
                              jnp.full((S - S // 2,), 2, jnp.int32)])
    t_row1 = jnp.ones((S,), jnp.int32)
    t = jnp.stack([t_row0, t_row1])
    ref = mot_reference(x, t, w, b)

    # Case 1: f32 compute, contiguous stream (homogeneous fast path), tight tol.
    wp32, bp32, od = prepare_mot_params(w, b, compute_dtype=jnp.float32)
    out1 = jax.block_until_ready(mot_forward(x, t, wp32, bp32, od, token_tile=128))
    ok &= bool(jnp.allclose(out1, ref, atol=2e-4, rtol=2e-4))

    # Case 2: default bf16 compute path (f32 MXU accumulation), loose tol.
    wpbf, bpbf, od = prepare_mot_params(w, b)               # bf16 default
    out2 = jax.block_until_ready(mot_forward(x, t, wpbf, bpbf, od))
    ok &= bool(jnp.allclose(out2, ref, atol=5e-2, rtol=5e-2))

    # Case 3: interleaved modalities -> mixed-tile path; also the sorted
    #         grouped-matmul path (sort_by_modality=True).
    t_int = jax.random.randint(jax.random.fold_in(key, 7), (B, S), 0, M,
                               dtype=jnp.int32)
    ref3 = mot_reference(x, t_int, w, b)
    out3a = jax.block_until_ready(
        mot_forward(x, t_int, wp32, bp32, od, token_tile=128))
    out3b = jax.block_until_ready(
        mot_forward(x, t_int, wp32, bp32, od, token_tile=128,
                    sort_by_modality=True))
    ok &= bool(jnp.allclose(out3a, ref3, atol=2e-4, rtol=2e-4))
    ok &= bool(jnp.allclose(out3b, ref3, atol=2e-4, rtol=2e-4))

    # Case 4: ragged / unaligned shapes + out-of-range type id (row -> zeros).
    B4, S4, D4, Do4, M4 = 2, 50, 32, 48, 2
    k4 = jax.random.fold_in(key, 11)
    k4x, k4t, k4w, k4b = jax.random.split(k4, 4)
    x4 = jax.random.normal(k4x, (B4, S4, D4), dtype=jnp.float32)
    t4 = jax.random.randint(k4t, (B4, S4), 0, M4, dtype=jnp.int32)
    t4 = t4.at[0, 3].set(7)                  # matches no modality -> zero row
    w4 = jax.random.normal(k4w, (M4, Do4, D4), dtype=jnp.float32) * 0.05
    b4 = jax.random.normal(k4b, (M4, Do4), dtype=jnp.float32) * 0.01
    wp4, bp4, od4 = prepare_mot_params(w4, b4, compute_dtype=jnp.float32)
    out4 = jax.block_until_ready(mot_forward(x4, t4, wp4, bp4, od4))
    ok &= bool(jnp.allclose(out4, mot_reference(x4, t4, w4, b4),
                            atol=2e-4, rtol=2e-4))

    # Case 5: ragged token count (N not a multiple of token_tile) -> exercises
    #         the no-pad ragged last tile (OOB reads ignored, OOB writes dropped).
    B5, S5, D5, Do5, M5 = 2, 200, 128, 128, 2
    k5 = jax.random.fold_in(key, 13)
    k5x, k5t, k5w, k5b = jax.random.split(k5, 4)
    x5 = jax.random.normal(k5x, (B5, S5, D5), dtype=jnp.float32)
    t5 = jax.random.randint(k5t, (B5, S5), 0, M5, dtype=jnp.int32)
    w5 = jax.random.normal(k5w, (M5, Do5, D5), dtype=jnp.float32) * 0.05
    b5 = jax.random.normal(k5b, (M5, Do5), dtype=jnp.float32) * 0.01
    wp5, bp5, od5 = prepare_mot_params(w5, b5, compute_dtype=jnp.float32)
    out5 = jax.block_until_ready(mot_forward(x5, t5, wp5, bp5, od5))
    ok &= bool(jnp.allclose(out5, mot_reference(x5, t5, w5, b5),
                            atol=2e-4, rtol=2e-4))

    assert ok, "mismatch vs reference"
    print("KERNEL_OK")
</pallas_src>

<mosaic_0001>
module attributes {stable_mosaic.version = 11 : i64} {
  func.func @_mot_kernel(%arg0: i32, %arg1: i32, %arg2: memref<3x4xi32, #tpu.memory_space<smem>>, %arg3: memref<4xi32, #tpu.memory_space<smem>>, %arg4: memref<128x1xi32, #tpu.memory_space<vmem>>, %arg5: memref<128x128xf32, #tpu.memory_space<vmem>>, %arg6: memref<3x128x256xf32, #tpu.memory_space<vmem>>, %arg7: memref<3x1x256xf32, #tpu.memory_space<vmem>>, %arg8: memref<128x256xf32, #tpu.memory_space<vmem>>, %arg9: memref<128x256xf32, #tpu.memory_space<vmem>>) attributes {dimension_semantics = [#tpu.dimension_semantics<arbitrary>, #tpu.dimension_semantics<parallel>], iteration_bounds = array<i64: 1, 4>, scalar_prefetch = 2 : i64, scratch_operands = 1 : i64, tpu.core_type = #tpu.core_type<tc>, window_params = [{transform_indices = @transform_0, window_bounds = array<i64: 128, 1>}, {transform_indices = @transform_1, window_bounds = array<i64: 128, 128>}, {transform_indices = @transform_2, window_bounds = array<i64: 3, 128, 256>}, {transform_indices = @transform_3, window_bounds = array<i64: 3, 1, 256>}, {transform_indices = @transform_4, window_bounds = array<i64: 128, 256>}]} {
    %c0 = arith.constant 0 : index
    %c0_0 = arith.constant 0 : index
    %0 = vector.load %arg5[%c0, %c0_0] : memref<128x128xf32, #tpu.memory_space<vmem>>, vector<128x128xf32>
    %1 = arith.index_cast %arg1 : i32 to index
    %2 = memref.load %arg3[%1] : memref<4xi32, #tpu.memory_space<smem>>
    %c0_i32 = arith.constant 0 : i32
    %3 = arith.cmpi eq, %2, %c0_i32 : i32
    %4 = arith.extui %3 : i1 to i32
    %c0_i32_1 = arith.constant 0 : i32
    %5 = arith.cmpi ne, %4, %c0_i32_1 : i32
    scf.if %5 {
      %c0_6 = arith.constant 0 : index
      %c0_7 = arith.constant 0 : index
      %c0_8 = arith.constant 0 : index
      %15 = vector.load %arg6[%c0_6, %c0_7, %c0_8] : memref<3x128x256xf32, #tpu.memory_space<vmem>>, vector<1x128x256xf32>
      %16 = vector.shape_cast %15 : vector<1x128x256xf32> to vector<128x256xf32>
      %cst = arith.constant dense<0.000000e+00> : vector<128x256xf32>
      %17 = tpu.matmul %0, %16, %cst {dimension_numbers = #tpu.dot_dimension_numbers<[1], [0], [0], [1], [0, 0, 1, 1], [], []>} : vector<128x128xf32>, vector<128x256xf32>, vector<128x256xf32> -> vector<128x256xf32>
      %c0_9 = arith.constant 0 : index
      %c0_10 = arith.constant 0 : index
      %c0_11 = arith.constant 0 : index
      %18 = vector.load %arg7[%c0_9, %c0_10, %c0_11] : memref<3x1x256xf32, #tpu.memory_space<vmem>>, vector<1x1x256xf32>
      %19 = vector.shape_cast %18 : vector<1x1x256xf32> to vector<1x256xf32>
      %20 = vector.broadcast %19 : vector<1x256xf32> to vector<128x256xf32>
      %21 = arith.addf %17, %20 : vector<128x256xf32>
      %c0_12 = arith.constant 0 : index
      %c0_13 = arith.constant 0 : index
      %22 = vector.load %arg8[%c0_12, %c0_13] : memref<128x256xf32, #tpu.memory_space<vmem>>, vector<128x256xf32>
      tpu.vector_store %arg8[%c0_12, %c0_13], %21 {strides = array<i32>} : memref<128x256xf32, #tpu.memory_space<vmem>>, vector<128x256xf32>,
    } else {
    }
    %c1_i32 = arith.constant 1 : i32
    %6 = arith.cmpi eq, %2, %c1_i32 : i32
    %7 = arith.extui %6 : i1 to i32
    %c0_i32_2 = arith.constant 0 : i32
    %8 = arith.cmpi ne, %7, %c0_i32_2 : i32
    scf.if %8 {
      %c1 = arith.constant 1 : index
      %c0_6 = arith.constant 0 : index
      %c0_7 = arith.constant 0 : index
      %15 = vector.load %arg6[%c1, %c0_6, %c0_7] : memref<3x128x256xf32, #tpu.memory_space<vmem>>, vector<1x128x256xf32>
      %16 = vector.shape_cast %15 : vector<1x128x256xf32> to vector<128x256xf32>
      %cst = arith.constant dense<0.000000e+00> : vector<128x256xf32>
      %17 = tpu.matmul %0, %16, %cst {dimension_numbers = #tpu.dot_dimension_numbers<[1], [0], [0], [1], [0, 0, 1, 1], [], []>} : vector<128x128xf32>, vector<128x256xf32>, vector<128x256xf32> -> vector<128x256xf32>
      %c1_8 = arith.constant 1 : index
      %c0_9 = arith.constant 0 : index
      %c0_10 = arith.constant 0 : index
      %18 = vector.load %arg7[%c1_8, %c0_9, %c0_10] : memref<3x1x256xf32, #tpu.memory_space<vmem>>, vector<1x1x256xf32>
      %19 = vector.shape_cast %18 : vector<1x1x256xf32> to vector<1x256xf32>
      %20 = vector.broadcast %19 : vector<1x256xf32> to vector<128x256xf32>
      %21 = arith.addf %17, %20 : vector<128x256xf32>
      %c0_11 = arith.constant 0 : index
      %c0_12 = arith.constant 0 : index
      %22 = vector.load %arg8[%c0_11, %c0_12] : memref<128x256xf32, #tpu.memory_space<vmem>>, vector<128x256xf32>
      tpu.vector_store %arg8[%c0_11, %c0_12], %21 {strides = array<i32>} : memref<128x256xf32, #tpu.memory_space<vmem>>, vector<128x256xf32>,
    } else {
    }
    %c2_i32 = arith.constant 2 : i32
    %9 = arith.cmpi eq, %2, %c2_i32 : i32
    %10 = arith.extui %9 : i1 to i32
    %c0_i32_3 = arith.constant 0 : i32
    %11 = arith.cmpi ne, %10, %c0_i32_3 : i32
    scf.if %11 {
      %c2 = arith.constant 2 : index
      %c0_6 = arith.constant 0 : index
      %c0_7 = arith.constant 0 : index
      %15 = vector.load %arg6[%c2, %c0_6, %c0_7] : memref<3x128x256xf32, #tpu.memory_space<vmem>>, vector<1x128x256xf32>
      %16 = vector.shape_cast %15 : vector<1x128x256xf32> to vector<128x256xf32>
      %cst = arith.constant dense<0.000000e+00> : vector<128x256xf32>
      %17 = tpu.matmul %0, %16, %cst {dimension_numbers = #tpu.dot_dimension_numbers<[1], [0], [0], [1], [0, 0, 1, 1], [], []>} : vector<128x128xf32>, vector<128x256xf32>, vector<128x256xf32> -> vector<128x256xf32>
      %c2_8 = arith.constant 2 : index
      %c0_9 = arith.constant 0 : index
      %c0_10 = arith.constant 0 : index
      %18 = vector.load %arg7[%c2_8, %c0_9, %c0_10] : memref<3x1x256xf32, #tpu.memory_space<vmem>>, vector<1x1x256xf32>
      %19 = vector.shape_cast %18 : vector<1x1x256xf32> to vector<1x256xf32>
      %20 = vector.broadcast %19 : vector<1x256xf32> to vector<128x256xf32>
      %21 = arith.addf %17, %20 : vector<128x256xf32>
      %c0_11 = arith.constant 0 : index
      %c0_12 = arith.constant 0 : index
      %22 = vector.load %arg8[%c0_11, %c0_12] : memref<128x256xf32, #tpu.memory_space<vmem>>, vector<128x256xf32>
      tpu.vector_store %arg8[%c0_11, %c0_12], %21 {strides = array<i32>} : memref<128x256xf32, #tpu.memory_space<vmem>>, vector<128x256xf32>,
    } else {
    }
    %c0_i32_4 = arith.constant 0 : i32
    %12 = arith.cmpi slt, %2, %c0_i32_4 : i32
    %13 = arith.extui %12 : i1 to i32
    %c0_i32_5 = arith.constant 0 : i32
    %14 = arith.cmpi ne, %13, %c0_i32_5 : i32
    scf.if %14 {
      %c0_6 = arith.constant 0 : index
      %c0_7 = arith.constant 0 : index
      %15 = vector.load %arg4[%c0_6, %c0_7] : memref<128x1xi32, #tpu.memory_space<vmem>>, vector<128x1xi32>
      %cst = arith.constant 0.000000e+00 : f32
      %16 = vector.broadcast %cst : f32 to vector<128x256xf32>
      %c0_8 = arith.constant 0 : index
      %c0_9 = arith.constant 0 : index
      %17 = vector.load %arg9[%c0_8, %c0_9] : memref<128x256xf32, #tpu.memory_space<vmem>>, vector<128x256xf32>
      tpu.vector_store %arg9[%c0_8, %c0_9], %16 {strides = array<i32>} : memref<128x256xf32, #tpu.memory_space<vmem>>, vector<128x256xf32>,
      %c0_10 = arith.constant 0 : index
      %18 = arith.index_cast %arg1 : i32 to index
      %19 = memref.load %arg2[%c0_10, %18] : memref<3x4xi32, #tpu.memory_space<smem>>
      %c0_i32_11 = arith.constant 0 : i32
      %20 = arith.cmpi ne, %19, %c0_i32_11 : i32
      %21 = arith.extui %20 : i1 to i32
      %c0_i32_12 = arith.constant 0 : i32
      %22 = arith.cmpi ne, %21, %c0_i32_12 : i32
      scf.if %22 {
        %c0_21 = arith.constant 0 : index
        %c0_22 = arith.constant 0 : index
        %c0_23 = arith.constant 0 : index
        %35 = vector.load %arg6[%c0_21, %c0_22, %c0_23] : memref<3x128x256xf32, #tpu.memory_space<vmem>>, vector<1x128x256xf32>
        %36 = vector.shape_cast %35 : vector<1x128x256xf32> to vector<128x256xf32>
        %cst_24 = arith.constant dense<0.000000e+00> : vector<128x256xf32>
        %37 = tpu.matmul %0, %36, %cst_24 {dimension_numbers = #tpu.dot_dimension_numbers<[1], [0], [0], [1], [0, 0, 1, 1], [], []>} : vector<128x128xf32>, vector<128x256xf32>, vector<128x256xf32> -> vector<128x256xf32>
        %c0_25 = arith.constant 0 : index
        %c0_26 = arith.constant 0 : index
        %c0_27 = arith.constant 0 : index
        %38 = vector.load %arg7[%c0_25, %c0_26, %c0_27] : memref<3x1x256xf32, #tpu.memory_space<vmem>>, vector<1x1x256xf32>
        %39 = vector.shape_cast %38 : vector<1x1x256xf32> to vector<1x256xf32>
        %40 = vector.broadcast %39 : vector<1x256xf32> to vector<128x256xf32>
        %41 = arith.addf %37, %40 : vector<128x256xf32>
        %c0_i32_28 = arith.constant 0 : i32
        %42 = vector.broadcast %c0_i32_28 : i32 to vector<128x1xi32>
        %43 = arith.cmpi eq, %15, %42 : vector<128x1xi32>
        %c0_29 = arith.constant 0 : index
        %c0_30 = arith.constant 0 : index
        %44 = vector.load %arg9[%c0_29, %c0_30] : memref<128x256xf32, #tpu.memory_space<vmem>>, vector<128x256xf32>
        %45 = vector.shape_cast %43 : vector<128x1xi1> to vector<128x1xi1>
        %46 = vector.broadcast %45 : vector<128x1xi1> to vector<128x256xi1>
        %47 = arith.select %46, %41, %44 : vector<128x256xi1>, vector<128x256xf32>
        %c0_31 = arith.constant 0 : index
        %c0_32 = arith.constant 0 : index
        %48 = vector.load %arg9[%c0_31, %c0_32] : memref<128x256xf32, #tpu.memory_space<vmem>>, vector<128x256xf32>
        tpu.vector_store %arg9[%c0_31, %c0_32], %47 {strides = array<i32>} : memref<128x256xf32, #tpu.memory_space<vmem>>, vector<128x256xf32>,
      } else {
      }
      %c1 = arith.constant 1 : index
      %23 = arith.index_cast %arg1 : i32 to index
      %24 = memref.load %arg2[%c1, %23] : memref<3x4xi32, #tpu.memory_space<smem>>
      %c0_i32_13 = arith.constant 0 : i32
      %25 = arith.cmpi ne, %24, %c0_i32_13 : i32
      %26 = arith.extui %25 : i1 to i32
      %c0_i32_14 = arith.constant 0 : i32
      %27 = arith.cmpi ne, %26, %c0_i32_14 : i32
      scf.if %27 {
        %c1_21 = arith.constant 1 : index
        %c0_22 = arith.constant 0 : index
        %c0_23 = arith.constant 0 : index
        %35 = vector.load %arg6[%c1_21, %c0_22, %c0_23] : memref<3x128x256xf32, #tpu.memory_space<vmem>>, vector<1x128x256xf32>
        %36 = vector.shape_cast %35 : vector<1x128x256xf32> to vector<128x256xf32>
        %cst_24 = arith.constant dense<0.000000e+00> : vector<128x256xf32>
        %37 = tpu.matmul %0, %36, %cst_24 {dimension_numbers = #tpu.dot_dimension_numbers<[1], [0], [0], [1], [0, 0, 1, 1], [], []>} : vector<128x128xf32>, vector<128x256xf32>, vector<128x256xf32> -> vector<128x256xf32>
        %c1_25 = arith.constant 1 : index
        %c0_26 = arith.constant 0 : index
        %c0_27 = arith.constant 0 : index
        %38 = vector.load %arg7[%c1_25, %c0_26, %c0_27] : memref<3x1x256xf32, #tpu.memory_space<vmem>>, vector<1x1x256xf32>
        %39 = vector.shape_cast %38 : vector<1x1x256xf32> to vector<1x256xf32>
        %40 = vector.broadcast %39 : vector<1x256xf32> to vector<128x256xf32>
        %41 = arith.addf %37, %40 : vector<128x256xf32>
        %c1_i32_28 = arith.constant 1 : i32
        %42 = vector.broadcast %c1_i32_28 : i32 to vector<128x1xi32>
        %43 = arith.cmpi eq, %15, %42 : vector<128x1xi32>
        %c0_29 = arith.constant 0 : index
        %c0_30 = arith.constant 0 : index
        %44 = vector.load %arg9[%c0_29, %c0_30] : memref<128x256xf32, #tpu.memory_space<vmem>>, vector<128x256xf32>
        %45 = vector.shape_cast %43 : vector<128x1xi1> to vector<128x1xi1>
        %46 = vector.broadcast %45 : vector<128x1xi1> to vector<128x256xi1>
        %47 = arith.select %46, %41, %44 : vector<128x256xi1>, vector<128x256xf32>
        %c0_31 = arith.constant 0 : index
        %c0_32 = arith.constant 0 : index
        %48 = vector.load %arg9[%c0_31, %c0_32] : memref<128x256xf32, #tpu.memory_space<vmem>>, vector<128x256xf32>
        tpu.vector_store %arg9[%c0_31, %c0_32], %47 {strides = array<i32>} : memref<128x256xf32, #tpu.memory_space<vmem>>, vector<128x256xf32>,
      } else {
      }
      %c2 = arith.constant 2 : index
      %28 = arith.index_cast %arg1 : i32 to index
      %29 = memref.load %arg2[%c2, %28] : memref<3x4xi32, #tpu.memory_space<smem>>
      %c0_i32_15 = arith.constant 0 : i32
      %30 = arith.cmpi ne, %29, %c0_i32_15 : i32
      %31 = arith.extui %30 : i1 to i32
      %c0_i32_16 = arith.constant 0 : i32
      %32 = arith.cmpi ne, %31, %c0_i32_16 : i32
      scf.if %32 {
        %c2_21 = arith.constant 2 : index
        %c0_22 = arith.constant 0 : index
        %c0_23 = arith.constant 0 : index
        %35 = vector.load %arg6[%c2_21, %c0_22, %c0_23] : memref<3x128x256xf32, #tpu.memory_space<vmem>>, vector<1x128x256xf32>
        %36 = vector.shape_cast %35 : vector<1x128x256xf32> to vector<128x256xf32>
        %cst_24 = arith.constant dense<0.000000e+00> : vector<128x256xf32>
        %37 = tpu.matmul %0, %36, %cst_24 {dimension_numbers = #tpu.dot_dimension_numbers<[1], [0], [0], [1], [0, 0, 1, 1], [], []>} : vector<128x128xf32>, vector<128x256xf32>, vector<128x256xf32> -> vector<128x256xf32>
        %c2_25 = arith.constant 2 : index
        %c0_26 = arith.constant 0 : index
        %c0_27 = arith.constant 0 : index
        %38 = vector.load %arg7[%c2_25, %c0_26, %c0_27] : memref<3x1x256xf32, #tpu.memory_space<vmem>>, vector<1x1x256xf32>
        %39 = vector.shape_cast %38 : vector<1x1x256xf32> to vector<1x256xf32>
        %40 = vector.broadcast %39 : vector<1x256xf32> to vector<128x256xf32>
        %41 = arith.addf %37, %40 : vector<128x256xf32>
        %c2_i32_28 = arith.constant 2 : i32
        %42 = vector.broadcast %c2_i32_28 : i32 to vector<128x1xi32>
        %43 = arith.cmpi eq, %15, %42 : vector<128x1xi32>
        %c0_29 = arith.constant 0 : index
        %c0_30 = arith.constant 0 : index
        %44 = vector.load %arg9[%c0_29, %c0_30] : memref<128x256xf32, #tpu.memory_space<vmem>>, vector<128x256xf32>
        %45 = vector.shape_cast %43 : vector<128x1xi1> to vector<128x1xi1>
        %46 = vector.broadcast %45 : vector<128x1xi1> to vector<128x256xi1>
        %47 = arith.select %46, %41, %44 : vector<128x256xi1>, vector<128x256xf32>
        %c0_31 = arith.constant 0 : index
        %c0_32 = arith.constant 0 : index
        %48 = vector.load %arg9[%c0_31, %c0_32] : memref<128x256xf32, #tpu.memory_space<vmem>>, vector<128x256xf32>
        tpu.vector_store %arg9[%c0_31, %c0_32], %47 {strides = array<i32>} : memref<128x256xf32, #tpu.memory_space<vmem>>, vector<128x256xf32>,
      } else {
      }
      %c0_17 = arith.constant 0 : index
      %c0_18 = arith.constant 0 : index
      %33 = vector.load %arg9[%c0_17, %c0_18] : memref<128x256xf32, #tpu.memory_space<vmem>>, vector<128x256xf32>
      %c0_19 = arith.constant 0 : index
      %c0_20 = arith.constant 0 : index
      %34 = vector.load %arg8[%c0_19, %c0_20] : memref<128x256xf32, #tpu.memory_space<vmem>>, vector<128x256xf32>
      tpu.vector_store %arg8[%c0_19, %c0_20], %33 {strides = array<i32>} : memref<128x256xf32, #tpu.memory_space<vmem>>, vector<128x256xf32>,
    } else {
    }
    return
  }
  func.func @transform_0(%arg0: i32, %arg1: i32, %arg2: memref<3x4xi32, #tpu.memory_space<smem>>, %arg3: memref<4xi32, #tpu.memory_space<smem>>) -> (i32, i32) {
    %c0_i32 = arith.constant 0 : i32
    %c0_i32_0 = arith.constant 0 : i32
    return %arg1, %c0_i32 : i32, i32
  }
  func.func @transform_1(%arg0: i32, %arg1: i32, %arg2: memref<3x4xi32, #tpu.memory_space<smem>>, %arg3: memref<4xi32, #tpu.memory_space<smem>>) -> (i32, i32) {
    %c0_i32 = arith.constant 0 : i32
    %c0_i32_0 = arith.constant 0 : i32
    return %arg1, %c0_i32 : i32, i32
  }
  func.func @transform_2(%arg0: i32, %arg1: i32, %arg2: memref<3x4xi32, #tpu.memory_space<smem>>, %arg3: memref<4xi32, #tpu.memory_space<smem>>) -> (i32, i32, i32) {
    %c0_i32 = arith.constant 0 : i32
    %c0_i32_0 = arith.constant 0 : i32
    %c0_i32_1 = arith.constant 0 : i32
    return %c0_i32, %c0_i32_0, %arg0 : i32, i32, i32
  }
  func.func @transform_3(%arg0: i32, %arg1: i32, %arg2: memref<3x4xi32, #tpu.memory_space<smem>>, %arg3: memref<4xi32, #tpu.memory_space<smem>>) -> (i32, i32, i32) {
    %c0_i32 = arith.constant 0 : i32
    %c0_i32_0 = arith.constant 0 : i32
    %c0_i32_1 = arith.constant 0 : i32
    return %c0_i32, %c0_i32_0, %arg0 : i32, i32, i32
  }
  func.func @transform_4(%arg0: i32, %arg1: i32, %arg2: memref<3x4xi32, #tpu.memory_space<smem>>, %arg3: memref<4xi32, #tpu.memory_space<smem>>) -> (i32, i32) {
    %c0_i32 = arith.constant 0 : i32
    return %arg1, %arg0 : i32, i32
  }
}

</mosaic_0001>

<llo_original>
// kernel: tpu_custom_call.1
$region0: #{tpu_custom_call.1}
  #allocation0 [shape = 'u32[]', space=smem, size = 0x4, offset = 0x4, fixed_abs, tag = 'smem constant byte address 0x4 - core index']
  #allocation1 [shape = 'u32[144,128]{1,0:T(1,128)}', space=vmem, size = 0x12000, scoped, tag = 'internal scratch']
  #allocation2 [shape = 'f32[128,256]{1,0:T(8,128)}', space=vmem, size = 0x20000, scoped, tag = 'scratch operand']
  #allocation3 [shape = 's32[1]{0}', space=sflag, size = 0x4, scoped, tag = 'scoped memory for tpu_custom_call.1']
  #allocation4 [shape = 'u8[2048]{0}', space=smem, size = 0x800, scoped, tag = 'prefetched SMEM operand 0']
  #allocation5 [shape = 'u8[512]{0}', space=smem, size = 0x200, scoped, tag = 'prefetched SMEM operand 1']
  %s0 = inlined_call_operand.vmem [shape: s32[3,4], index: 0, kind: input, shape index: {}]
  %s1 = inlined_call_operand.vmem [shape: s32[4], index: 1, kind: input, shape index: {}]
  %s2 = inlined_call_operand.vmem [shape: s32[512,1], index: 2, kind: input, shape index: {}]
  %s3 = inlined_call_operand.vmem [shape: f32[512,128], index: 3, kind: input, shape index: {}]
  %s4 = inlined_call_operand.hbm [shape: f32[3,128,256], index: 4, kind: input, shape index: {}]
  %s5 = inlined_call_operand.vmem [shape: f32[3,1,256], index: 5, kind: input, shape index: {}]
  %s6 = inlined_call_operand.hbm [shape: f32[512,256], index: 6, kind: output, shape index: {}]
  %s7 = sld [smem:[#allocation0]]
  $region81: #{tpu_custom_call.1} parent=0
    _
  %s9 = ssub.s32 1, %s7
  %s10 = scalar_select 0, %s9, %s7
  %s11 = sshll.u32 %s0, 4
  %s12 = int_to_ptr.vmem [resolvable:$true] %s11
  %14 = dma.vmem_to_smem %s12, 64, [#allocation4], [#allocation3]
  %s15 = sshll.u32 %s1, 4
  %s16 = int_to_ptr.vmem [resolvable:$true] %s15
  %18 = dma.vmem_to_smem %s16, 16, [#allocation5], [#allocation3]
  %19 = dma.done [#allocation3], 80
  %20 = sfence
  $region1: #{tpu_custom_call.1} parent=0
    #allocation6 [shape = 'u8[393216]{0}', space=vmem, size = 0x60000, scoped, tag = 'input window, operand 4, single buffered']
    #allocation7 [shape = 's32[2]{0}', space=sflag, size = 0x8, scoped, tag = 'scoped memory for tpu_custom_call.1']
    #allocation8 [shape = 's32[2]{0}', space=sflag, size = 0x8, scoped, tag = 'scoped memory for tpu_custom_call.1']
    #allocation9 [shape = 'u8[262144]{0}', space=vmem, size = 0x40000, scoped, tag = 'output window, operand 0']
    %21 = vsyncpa [#allocation7], 0
    %22 = vsyncpa [#allocation8], 0
    %s23 = scalar_lea.sflag [#allocation8], 1
    %24 = vsyncpa %s23, 0
    loop: start=0, step=1, limit=6
    $region2: #{tpu_custom_call.1} parent=1 // loop_pre_header
      _
    $region3: #{tpu_custom_call.1} parent=1 // loop_header
      %s26 = sphi 0, %s30
      %p27 = scmp.ge.s32.totalorder %s26, 6
      %s33 = sphi 0, %s45
      %s34 = sphi 0, %s41
      %s35 = sphi 0, %s33
      %s36 = sphi 0, %s34
      %s37 = sphi 0, %s35
      %s38 = sphi 0, %s36
      %s48 = sphi 0, %s50
      %s51 = sphi 0, %s48
      %s52 = sphi 0, %s51
      %s68 = sphi 0, %s52
      %s74 = sphi 0, %s76
      %s77 = sphi 0, %s74
      %s78 = sphi 0, %s77
      %s94 = sphi 0, %s78
      %s100 = sphi 0, %s102
      %s103 = sphi 0, %s100
      %s104 = sphi 0, %s103
      %s120 = sphi 0, %s104
      %s126 = sphi 0, %s128
      %s129 = sphi 0, %s126
      %s130 = sphi 0, %s129
      %s146 = sphi 0, %s130
      %s154 = sphi 0, %s156
      %s157 = sphi 0, %s154
      %s158 = sphi 0, %s157
      %s174 = sphi 0, %s158
    $region4: #{tpu_custom_call.1} parent=1 // loop_header_branch
      %29 = sbr.rel (%p27) target = $region8
    $region5: #{tpu_custom_call.1} parent=1 // loop_body
      %s31 = ssub.s32 %s26, 1
      %s32 = ssub.s32 %s26, 2
      %s39 = sadd.s32 1, %s34
      %p40 = scmp.ge.s32.totalorder %s39, 4
      %s41 = scalar_select %p40, 0, %s39
      %s42 = sadd.s32 1, %s33
      %s43 = scalar_select %p40, %s42, %s33
      %p44 = scmp.ge.s32.totalorder %s43, 1
      %s45 = scalar_select %p44, 0, %s43
      %s46 = ssub.s32 %s34, %s41
      %p47 = scmp.eq.s32.totalorder %s46, 0
      %s49 = sadd.s32 %s48, 1
      %s50 = scalar_select %p47, %s48, %s49
      %p53 = pneg %p47
      %p54 = scmp.eq.s32.totalorder %s26, 3
      %p55 = por %p53, %p54
      %p56 = scmp.ne.s32.totalorder %s48, %s51
      %p57 = scmp.eq.s32.totalorder %s26, 0
      %p58 = por %p56, %p57
      %p59 = scmp.ne.s32.totalorder %s48, %s51
      %p60 = scmp.eq.s32.totalorder %s31, 3
      %p61 = por %p59, %p60
      %p62 = scmp.ne.s32.totalorder %s51, %s52
      %p63 = scmp.eq.s32.totalorder %s31, 0
      %p64 = por %p62, %p63
      %p65 = scmp.ne.s32.totalorder %s51, %s52
      %p66 = scmp.eq.s32.totalorder %s32, 3
      %p67 = por %p65, %p66
      %p69 = scmp.ne.s32.totalorder %s52, %s68
      %p70 = scmp.eq.s32.totalorder %s32, 0
      %p71 = por %p69, %p70
      %s72 = ssub.s32 %s34, %s41
      %p73 = scmp.eq.s32.totalorder %s72, 0
      %s75 = sadd.s32 %s74, 1
      %s76 = scalar_select %p73, %s74, %s75
      %p79 = pneg %p73
      %p80 = scmp.eq.s32.totalorder %s26, 3
      %p81 = por %p79, %p80
      %p82 = scmp.ne.s32.totalorder %s74, %s77
      %p83 = scmp.eq.s32.totalorder %s26, 0
      %p84 = por %p82, %p83
      %p85 = scmp.ne.s32.totalorder %s74, %s77
      %p86 = scmp.eq.s32.totalorder %s31, 3
      %p87 = por %p85, %p86
      %p88 = scmp.ne.s32.totalorder %s77, %s78
      %p89 = scmp.eq.s32.totalorder %s31, 0
      %p90 = por %p88, %p89
      %p91 = scmp.ne.s32.totalorder %s77, %s78
      %p92 = scmp.eq.s32.totalorder %s32, 3
      %p93 = por %p91, %p92
      %p95 = scmp.ne.s32.totalorder %s78, %s94
      %p96 = scmp.eq.s32.totalorder %s32, 0
      %p97 = por %p95, %p96
      %s98 = ssub.s32 %s33, %s45
      %p99 = scmp.eq.s32.totalorder %s98, 0
      %s101 = sadd.s32 %s100, 1
      %s102 = scalar_select %p99, %s100, %s101
      %p105 = pneg %p99
      %p106 = scmp.eq.s32.totalorder %s26, 3
      %p107 = por %p105, %p106
      %p108 = scmp.ne.s32.totalorder %s100, %s103
      %p109 = scmp.eq.s32.totalorder %s26, 0
      %p110 = por %p108, %p109
      %p111 = scmp.ne.s32.totalorder %s100, %s103
      %p112 = scmp.eq.s32.totalorder %s31, 3
      %p113 = por %p111, %p112
      %p114 = scmp.ne.s32.totalorder %s103, %s104
      %p115 = scmp.eq.s32.totalorder %s31, 0
      %p116 = por %p114, %p115
      %p117 = scmp.ne.s32.totalorder %s103, %s104
      %p118 = scmp.eq.s32.totalorder %s32, 3
      %p119 = por %p117, %p118
      %p121 = scmp.ne.s32.totalorder %s104, %s120
      %p122 = scmp.eq.s32.totalorder %s32, 0
      %p123 = por %p121, %p122
      %s124 = ssub.s32 %s33, %s45
      %p125 = scmp.eq.s32.totalorder %s124, 0
      %s127 = sadd.s32 %s126, 1
      %s128 = scalar_select %p125, %s126, %s127
      %p131 = pneg %p125
      %p132 = scmp.eq.s32.totalorder %s26, 3
      %p133 = por %p131, %p132
      %p134 = scmp.ne.s32.totalorder %s126, %s129
      %p135 = scmp.eq.s32.totalorder %s26, 0
      %p136 = por %p134, %p135
      %p137 = scmp.ne.s32.totalorder %s126, %s129
      %p138 = scmp.eq.s32.totalorder %s31, 3
      %p139 = por %p137, %p138
      %p140 = scmp.ne.s32.totalorder %s129, %s130
      %p141 = scmp.eq.s32.totalorder %s31, 0
      %p142 = por %p140, %p141
      %p143 = scmp.ne.s32.totalorder %s129, %s130
      %p144 = scmp.eq.s32.totalorder %s32, 3
      %p145 = por %p143, %p144
      %p147 = scmp.ne.s32.totalorder %s130, %s146
      %p148 = scmp.eq.s32.totalorder %s32, 0
      %p149 = por %p147, %p148
      %s150 = ssub.s32 %s34, %s41
      %s151 = ssub.s32 %s33, %s45
      %s152 = sor.u32 %s150, %s151
      %p153 = scmp.eq.s32.totalorder %s152, 0
      %s155 = sadd.s32 %s154, 1
      %s156 = scalar_select %p153, %s154, %s155
      %p159 = pneg %p153
      %p160 = scmp.eq.s32.totalorder %s26, 3
      %p161 = por %p159, %p160
      %p162 = scmp.ne.s32.totalorder %s154, %s157
      %p163 = scmp.eq.s32.totalorder %s26, 0
      %p164 = por %p162, %p163
      %p165 = scmp.ne.s32.totalorder %s154, %s157
      %p166 = scmp.eq.s32.totalorder %s31, 3
      %p167 = por %p165, %p166
      %p168 = scmp.ne.s32.totalorder %s157, %s158
      %p169 = scmp.eq.s32.totalorder %s31, 0
      %p170 = por %p168, %p169
      %p171 = scmp.ne.s32.totalorder %s157, %s158
      %p172 = scmp.eq.s32.totalorder %s32, 3
      %p173 = por %p171, %p172
      %p175 = scmp.ne.s32.totalorder %s158, %s174
      %p176 = scmp.eq.s32.totalorder %s32, 0
      %p177 = por %p175, %p176
      %p178 = scmp.le.s32.totalorder 1, %s26
      %p179 = scmp.lt.s32.totalorder %s26, 5
      %p180 = pnand %p178, %p179
      %p181 = pneg %p180
      // Predicated region
      $region9: #{tpu_custom_call.1} parent=5 // pred_check
        _
      $region10: #{tpu_custom_call.1} parent=5 // pred_check_branch
        %183 = sbr.rel (%p180) target = $region12
      $region11: #{tpu_custom_call.1} parent=5 // pred_region
        %s184 = ssub.s32 %s26, 1
        // Predicated region
        $region13: #{tpu_custom_call.1} parent=11 // pred_check
          %p185 = pneg %p116
        $region14: #{tpu_custom_call.1} parent=11 // pred_check_branch
          %187 = sbr.rel (%p185) target = $region16
        $region15: #{tpu_custom_call.1} parent=11 // pred_region
          %s188 = smul.u32 2, %s35
          %s190 = ssub.s32 12288, 12288
          %191 = vsyncadd [#allocation7], %s190
          %s192 = smul.addr %s188, 128
          %s193 = scalar_lea.hbm %s4, %s192
          %s194 = sshll.u32 [#allocation6], 4
          %s195 = int_to_ptr.vmem [resolvable:$true] %s194
          %200 = dma.hbm_to_vmem [thread:$0]  %s193, 12288, %s195, [#allocation7], 256, 256, 16
        $region16: #{tpu_custom_call.1} parent=11 // pred_fallthru
          _
        // Predicated region
        $region17: #{tpu_custom_call.1} parent=11 // pred_check
          %p201 = pneg %p142
        $region18: #{tpu_custom_call.1} parent=11 // pred_check_branch
          %203 = sbr.rel (%p201) target = $region20
        $region19: #{tpu_custom_call.1} parent=11 // pred_region
          %s204 = smul.u32 2, %s35
          %p205 = scmp.lt.s32.totalorder %s204, 1
          %s206 = scalar_select %p205, %s204, 1
          %s207 = scalar_lea.vmem %s5, %s206
          %s208 = smul.u32 2, %s35
        $region20: #{tpu_custom_call.1} parent=11 // pred_fallthru
          _
      $region12: #{tpu_custom_call.1} parent=5 // pred_fallthru
        _
      %p209 = scmp.lt.s32.totalorder %s26, 4
      // Predicated region
      $region21: #{tpu_custom_call.1} parent=5 // pred_check
        %p210 = pneg %p209
      $region22: #{tpu_custom_call.1} parent=5 // pred_check_branch
        %212 = sbr.rel (%p210) target = $region24
      $region23: #{tpu_custom_call.1} parent=5 // pred_region
        // Predicated region
        $region25: #{tpu_custom_call.1} parent=23 // pred_check
          %p213 = pneg %p58
        $region26: #{tpu_custom_call.1} parent=23 // pred_check_branch
          %215 = sbr.rel (%p213) target = $region28
        $region27: #{tpu_custom_call.1} parent=23 // pred_region
          %s216 = smul.u32 16, %s34
          %p217 = scmp.lt.s32.totalorder %s216, 63
          %s218 = scalar_select %p217, %s216, 63
          %s219 = smul.addr %s218, 8
          %s220 = scalar_lea.vmem %s2, %s219
          %s221 = smul.u32 16, %s34
        $region28: #{tpu_custom_call.1} parent=23 // pred_fallthru
          _
        // Predicated region
        $region29: #{tpu_custom_call.1} parent=23 // pred_check
          %p222 = pneg %p84
        $region30: #{tpu_custom_call.1} parent=23 // pred_check_branch
          %224 = sbr.rel (%p222) target = $region32
        $region31: #{tpu_custom_call.1} parent=23 // pred_region
          %s225 = smul.u32 16, %s34
          %p226 = scmp.lt.s32.totalorder %s225, 63
          %s227 = scalar_select %p226, %s225, 63
          %s228 = smul.addr %s227, 8
          %s229 = scalar_lea.vmem %s3, %s228
          %s230 = smul.u32 16, %s34
        $region32: #{tpu_custom_call.1} parent=23 // pred_fallthru
          _
      $region24: #{tpu_custom_call.1} parent=5 // pred_fallthru
        _
      %p231 = scmp.le.s32.totalorder 1, %s26
      %p232 = scmp.lt.s32.totalorder %s26, 5
      %p233 = pnand %p231, %p232
      %p234 = pneg %p233
      // Predicated region
      $region33: #{tpu_custom_call.1} parent=5 // pred_check
        _
      $region34: #{tpu_custom_call.1} parent=5 // pred_check_branch
        %236 = sbr.rel (%p233) target = $region36
      $region35: #{tpu_custom_call.1} parent=5 // pred_region
        %s237 = ssub.s32 %s26, 1
        // Predicated region
        $region37: #{tpu_custom_call.1} parent=35 // pred_check
          %p238 = pneg %p116
        $region38: #{tpu_custom_call.1} parent=35 // pred_check_branch
          %240 = sbr.rel (%p238) target = $region40
        $region39: #{tpu_custom_call.1} parent=35 // pred_region
          %241 = dma.done [#allocation7], 12288
        $region40: #{tpu_custom_call.1} parent=35 // pred_fallthru
          _
        %s242 = smul.u32 16, %s36
        %p243 = scmp.lt.s32.totalorder %s242, 63
        %s244 = scalar_select %p243, %s242, 63
        %s245 = smul.addr %s244, 8
        %s246 = scalar_lea.vmem %s2, %s245
        %p247 = pneg %p64
        %p248 = pneg %p61
        %s249 = smul.u32 16, %s36
        %p250 = scmp.lt.s32.totalorder %s249, 63
        %s251 = scalar_select %p250, %s249, 63
        %s252 = smul.addr %s251, 8
        %s253 = scalar_lea.vmem %s3, %s252
        %p254 = pneg %p90
        %p255 = pneg %p87
        %p256 = pneg %p116
        %p257 = pneg %p113
        %s258 = smul.u32 2, %s35
        %p259 = scmp.lt.s32.totalorder %s258, 1
        %s260 = scalar_select %p259, %s258, 1
        %s261 = scalar_lea.vmem %s5, %s260
        %p262 = pneg %p142
        %p263 = pneg %p139
        %p264 = pneg %p170
        %p265 = pneg %p167
        %s266 = sand.u32 %s157, 1
        %s267 = scalar_lea.sflag [#allocation8], %s266
        %s268 = sand.u32 %s157, 1
        %s269 = smul.addr %s268, 256
        %s270 = scalar_lea.vmem [#allocation9], %s269
        %s271 = smul.u32 16, %s36
        %p272 = scmp.lt.s32.totalorder %s271, 63
        %s273 = scalar_select %p272, %s271, 63
        %s274 = smul.addr %s273, 8
        %s275 = scalar_lea.vmem %s2, %s274
        %s276 = smul.u32 16, %s36
        %s277 = smul.u32 16, %s36
        %p278 = scmp.lt.s32.totalorder %s277, 63
        %s279 = scalar_select %p278, %s277, 63
        %s280 = smul.addr %s279, 8
        %s281 = scalar_lea.vmem %s3, %s280
        %s282 = smul.u32 16, %s36
        %s283 = smul.u32 2, %s35
        %s284 = smul.u32 2, %s35
        %p285 = scmp.lt.s32.totalorder %s284, 1
        %s286 = scalar_select %p285, %s284, 1
        %s287 = scalar_lea.vmem %s5, %s286
        %s288 = smul.u32 2, %s35
        %s289 = smul.u32 16, %s36
        %s290 = smul.u32 2, %s35
        %v291 = vld [vmem:[%s281] sm:$0xff]
        %v292 = vld [vmem:[%s281 + $0x8] sm:$0xff]
        %v293 = vld [vmem:[%s281 + $0x10] sm:$0xff]
        %v294 = vld [vmem:[%s281 + $0x18] sm:$0xff]
        %v295 = vld [vmem:[%s281 + $0x20] sm:$0xff]
        %v296 = vld [vmem:[%s281 + $0x28] sm:$0xff]
        %v297 = vld [vmem:[%s281 + $0x30] sm:$0xff]
        %v298 = vld [vmem:[%s281 + $0x38] sm:$0xff]
        %v299 = vld [vmem:[%s281 + $0x40] sm:$0xff]
        %v300 = vld [vmem:[%s281 + $0x48] sm:$0xff]
        %v301 = vld [vmem:[%s281 + $0x50] sm:$0xff]
        %v302 = vld [vmem:[%s281 + $0x58] sm:$0xff]
        %v303 = vld [vmem:[%s281 + $0x60] sm:$0xff]
        %v304 = vld [vmem:[%s281 + $0x68] sm:$0xff]
        %v305 = vld [vmem:[%s281 + $0x70] sm:$0xff]
        %v306 = vld [vmem:[%s281 + $0x78] sm:$0xff]
        %s307 = sld [smem:[#allocation5 + %s36]]
        %p308 = scmp.eq.s32.totalorder %s307, 0
        // Predicated region
        $region41: #{tpu_custom_call.1} parent=35 // pred_check
          %p309 = pneg %p308
        $region42: #{tpu_custom_call.1} parent=35 // pred_check_branch
          %311 = sbr.rel (%p309) target = $region44
        $region43: #{tpu_custom_call.1} parent=35 // pred_region
          %v312 = vld [vmem:[#allocation6] sm:$0xff]
          %v313 = vld [vmem:[#allocation6 + $0x8] sm:$0xff]
          %v314 = vld [vmem:[#allocation6 + $0x10] sm:$0xff]
          %v315 = vld [vmem:[#allocation6 + $0x18] sm:$0xff]
          %v316 = vld [vmem:[#allocation6 + $0x20] sm:$0xff]
          %v317 = vld [vmem:[#allocation6 + $0x28] sm:$0xff]
          %v318 = vld [vmem:[#allocation6 + $0x30] sm:$0xff]
          %v319 = vld [vmem:[#allocation6 + $0x38] sm:$0xff]
          %v320 = vld [vmem:[#allocation6 + $0x40] sm:$0xff]
          %v321 = vld [vmem:[#allocation6 + $0x48] sm:$0xff]
          %v322 = vld [vmem:[#allocation6 + $0x50] sm:$0xff]
          %v323 = vld [vmem:[#allocation6 + $0x58] sm:$0xff]
          %v324 = vld [vmem:[#allocation6 + $0x60] sm:$0xff]
          %v325 = vld [vmem:[#allocation6 + $0x68] sm:$0xff]
          %v326 = vld [vmem:[#allocation6 + $0x70] sm:$0xff]
          %v327 = vld [vmem:[#allocation6 + $0x78] sm:$0xff]
          %v328 = vld [vmem:[#allocation6 + $0x80] sm:$0xff]
          %v329 = vld [vmem:[#allocation6 + $0x88] sm:$0xff]
          %v330 = vld [vmem:[#allocation6 + $0x90] sm:$0xff]
          %v331 = vld [vmem:[#allocation6 + $0x98] sm:$0xff]
          %v332 = vld [vmem:[#allocation6 + $0xa0] sm:$0xff]
          %v333 = vld [vmem:[#allocation6 + $0xa8] sm:$0xff]
          %v334 = vld [vmem:[#allocation6 + $0xb0] sm:$0xff]
          %v335 = vld [vmem:[#allocation6 + $0xb8] sm:$0xff]
          %v336 = vld [vmem:[#allocation6 + $0xc0] sm:$0xff]
          %v337 = vld [vmem:[#allocation6 + $0xc8] sm:$0xff]
          %v338 = vld [vmem:[#allocation6 + $0xd0] sm:$0xff]
          %v339 = vld [vmem:[#allocation6 + $0xd8] sm:$0xff]
          %v340 = vld [vmem:[#allocation6 + $0xe0] sm:$0xff]
          %v341 = vld [vmem:[#allocation6 + $0xe8] sm:$0xff]
          %v342 = vld [vmem:[#allocation6 + $0xf0] sm:$0xff]
          %v343 = vld [vmem:[#allocation6 + $0xf8] sm:$0xff]
          %v344 = vld [vmem:[%s287] sm:$0x3]
          %v346 = vlaneseq
          %v347 = vshrl.u32 %v346, 7
          %v348 = vsub.s32 0, %v347
          %v349 = vrot.slane %v344, %v348
          %v350 = vlaneseq
          %v351 = vshrl.u32 %v350, 7
          %v352 = vsub.s32 1, %v351
          %v353 = vrot.slane %v344, %v352
          %356 = vmatprep.subr.mxu0 %v313
          %357 = vmatpush1.msra.mxu0 %v312
          %358 = vmatprep.subr.mxu0 %v315
          %359 = vmatpush1.msra.mxu0 %v314
          %360 = vmatprep.subr.mxu0 %v317
          %361 = vmatpush1.msra.mxu0 %v316
          %362 = vmatprep.subr.mxu0 %v319
          %363 = vmatpush1.msra.mxu0 %v318
          %364 = vmatprep.subr.mxu0 %v321
          %365 = vmatpush1.msra.mxu0 %v320
          %366 = vmatprep.subr.mxu0 %v323
          %367 = vmatpush1.msra.mxu0 %v322
          %368 = vmatprep.subr.mxu0 %v325
          %369 = vmatpush1.msra.mxu0 %v324
          %370 = vmatprep.subr.mxu0 %v327
          %371 = vmatpush1.msra.mxu0 %v326
          %372 = vmatprep.subr.mxu0 %v329
          %373 = vmatpush1.msra.mxu0 %v328
          %374 = vmatprep.subr.mxu0 %v331
          %375 = vmatpush1.msra.mxu0 %v330
          %376 = vmatprep.subr.mxu0 %v333
          %377 = vmatpush1.msra.mxu0 %v332
          %378 = vmatprep.subr.mxu0 %v335
          %379 = vmatpush1.msra.mxu0 %v334
          %380 = vmatprep.subr.mxu0 %v337
          %381 = vmatpush1.msra.mxu0 %v336
          %382 = vmatprep.subr.mxu0 %v339
          %383 = vmatpush1.msra.mxu0 %v338
          %384 = vmatprep.subr.mxu0 %v341
          %385 = vmatpush1.msra.mxu0 %v340
          %386 = vmatprep.subr.mxu0 %v343
          %387 = vmatpush1.msra.mxu0 %v342
          %388 = vmatprep.subr.mxu0 0.0
          %389 = vmatpush1.msra.mxu0 0.0
          %390 = vmatprep.subr.mxu0 0.0
          %391 = vmatpush1.msra.mxu0 0.0
          %392 = vmatprep.subr.mxu0 0.0
          %393 = vmatpush1.msra.mxu0 0.0
          %394 = vmatprep.subr.mxu0 0.0
          %395 = vmatpush1.msra.mxu0 0.0
          %396 = vmatprep.subr.mxu0 0.0
          %397 = vmatpush1.msra.mxu0 0.0
          %398 = vmatprep.subr.mxu0 0.0
          %399 = vmatpush1.msra.mxu0 0.0
          %400 = vmatprep.subr.mxu0 0.0
          %401 = vmatpush1.msra.mxu0 0.0
          %402 = vmatprep.subr.mxu0 0.0
          %403 = vmatpush1.msra.mxu0 0.0
          %404 = vmatprep.subr.mxu0 0.0
          %405 = vmatpush1.msra.mxu0 0.0
          %406 = vmatprep.subr.mxu0 0.0
          %407 = vmatpush1.msra.mxu0 0.0
          %408 = vmatprep.subr.mxu0 0.0
          %409 = vmatpush1.msra.mxu0 0.0
          %410 = vmatprep.subr.mxu0 0.0
          %411 = vmatpush1.msra.mxu0 0.0
          %412 = vmatprep.subr.mxu0 0.0
          %413 = vmatpush1.msra.mxu0 0.0
          %414 = vmatprep.subr.mxu0 0.0
          %415 = vmatpush1.msra.mxu0 0.0
          %416 = vmatprep.subr.mxu0 0.0
          %417 = vmatpush1.msra.mxu0 0.0
          %418 = vmatprep.subr.mxu0 0.0
          %419 = vmatpush1.msra.mxu0 0.0
          %420 = vmatprep.mubr.f32.mxu0 0.0
          %421 = vmatmul.mubr.f32.gmra.mrb[0].mxu0 %v291
          %v422 = vpop.f32.mrb[0].mxu0
          %v423 = vadd.f32 %v349, %v422
          %v424 = vpop.f32.mrb[0].mxu0
          %v425 = vadd.f32 %v353, %v424
          %426 = vmatprep.mubr.f32.mxu0 0.0
          %427 = vmatmul.mubr.f32.gmra.mrb[0].mxu0 %v292
          %v428 = vpop.f32.mrb[0].mxu0
          %v429 = vadd.f32 %v349, %v428
          %v430 = vpop.f32.mrb[0].mxu0
          %v431 = vadd.f32 %v353, %v430
          %432 = vmatprep.mubr.f32.mxu0 0.0
          %433 = vmatmul.mubr.f32.gmra.mrb[0].mxu0 %v293
          %v434 = vpop.f32.mrb[0].mxu0
          %v435 = vadd.f32 %v349, %v434
          %v436 = vpop.f32.mrb[0].mxu0
          %v437 = vadd.f32 %v353, %v436
          %438 = vmatprep.mubr.f32.mxu0 0.0
          %439 = vmatmul.mubr.f32.gmra.mrb[0].mxu0 %v294
          %v440 = vpop.f32.mrb[0].mxu0
          %v441 = vadd.f32 %v349, %v440
          %v442 = vpop.f32.mrb[0].mxu0
          %v443 = vadd.f32 %v353, %v442
          %444 = vmatprep.mubr.f32.mxu0 0.0
          %445 = vmatmul.mubr.f32.gmra.mrb[0].mxu0 %v295
          %v446 = vpop.f32.mrb[0].mxu0
          %v447 = vadd.f32 %v349, %v446
          %v448 = vpop.f32.mrb[0].mxu0
          %v449 = vadd.f32 %v353, %v448
          %450 = vmatprep.mubr.f32.mxu0 0.0
          %451 = vmatmul.mubr.f32.gmra.mrb[0].mxu0 %v296
          %v452 = vpop.f32.mrb[0].mxu0
          %v453 = vadd.f32 %v349, %v452
          %v454 = vpop.f32.mrb[0].mxu0
          %v455 = vadd.f32 %v353, %v454
          %456 = vmatprep.mubr.f32.mxu0 0.0
          %457 = vmatmul.mubr.f32.gmra.mrb[0].mxu0 %v297
          %v458 = vpop.f32.mrb[0].mxu0
          %v459 = vadd.f32 %v349, %v458
          %v460 = vpop.f32.mrb[0].mxu0
          %v461 = vadd.f32 %v353, %v460
          %462 = vmatprep.mubr.f32.mxu0 0.0
          %463 = vmatmul.mubr.f32.gmra.mrb[0].mxu0 %v298
          %v464 = vpop.f32.mrb[0].mxu0
          %v465 = vadd.f32 %v349, %v464
          %v466 = vpop.f32.mrb[0].mxu0
          %v467 = vadd.f32 %v353, %v466
          %468 = vmatprep.mubr.f32.mxu0 0.0
          %469 = vmatmul.mubr.f32.gmra.mrb[0].mxu0 %v299
          %v470 = vpop.f32.mrb[0].mxu0
          %v471 = vadd.f32 %v349, %v470
          %v472 = vpop.f32.mrb[0].mxu0
          %v473 = vadd.f32 %v353, %v472
          %474 = vmatprep.mubr.f32.mxu0 0.0
          %475 = vmatmul.mubr.f32.gmra.mrb[0].mxu0 %v300
          %v476 = vpop.f32.mrb[0].mxu0
          %v477 = vadd.f32 %v349, %v476
          %v478 = vpop.f32.mrb[0].mxu0
          %v479 = vadd.f32 %v353, %v478
          %480 = vmatprep.mubr.f32.mxu0 0.0
          %481 = vmatmul.mubr.f32.gmra.mrb[0].mxu0 %v301
          %v482 = vpop.f32.mrb[0].mxu0
          %v483 = vadd.f32 %v349, %v482
          %v484 = vpop.f32.mrb[0].mxu0
          %v485 = vadd.f32 %v353, %v484
          %486 = vmatprep.mubr.f32.mxu0 0.0
          %487 = vmatmul.mubr.f32.gmra.mrb[0].mxu0 %v302
          %v488 = vpop.f32.mrb[0].mxu0
          %v489 = vadd.f32 %v349, %v488
          %v490 = vpop.f32.mrb[0].mxu0
          %v491 = vadd.f32 %v353, %v490
          %492 = vmatprep.mubr.f32.mxu0 0.0
          %493 = vmatmul.mubr.f32.gmra.mrb[0].mxu0 %v303
          %v494 = vpop.f32.mrb[0].mxu0
          %v495 = vadd.f32 %v349, %v494
          %v496 = vpop.f32.mrb[0].mxu0
          %v497 = vadd.f32 %v353, %v496
          %498 = vmatprep.mubr.f32.mxu0 0.0
          %499 = vmatmul.mubr.f32.gmra.mrb[0].mxu0 %v304
          %v500 = vpop.f32.mrb[0].mxu0
          %v501 = vadd.f32 %v349, %v500
          %v502 = vpop.f32.mrb[0].mxu0
          %v503 = vadd.f32 %v353, %v502
          %504 = vmatprep.mubr.f32.mxu0 0.0
          %505 = vmatmul.mubr.f32.gmra.mrb[0].mxu0 %v305
          %v506 = vpop.f32.mrb[0].mxu0
          %v507 = vadd.f32 %v349, %v506
          %v508 = vpop.f32.mrb[0].mxu0
          %v509 = vadd.f32 %v353, %v508
          %510 = vmatprep.mubr.f32.mxu0 0.0
          %511 = vmatmul.mubr.f32.gmra.mrb[0].mxu0 %v306
          %v512 = vpop.f32.mrb[0].mxu0
          %v513 = vadd.f32 %v349, %v512
          %v514 = vpop.f32.mrb[0].mxu0
          %v515 = vadd.f32 %v353, %v514
          %516 = vdwg.mxu0
          %517 = vst [vmem:[%s270] sm:$0xff] %v423
          %518 = vst [vmem:[%s270 + $0x8] sm:$0xff] %v425
          %519 = vst [vmem:[%s270 + $0x10] sm:$0xff] %v429
          %520 = vst [vmem:[%s270 + $0x18] sm:$0xff] %v431
          %521 = vst [vmem:[%s270 + $0x20] sm:$0xff] %v435
          %522 = vst [vmem:[%s270 + $0x28] sm:$0xff] %v437
          %523 = vst [vmem:[%s270 + $0x30] sm:$0xff] %v441
          %524 = vst [vmem:[%s270 + $0x38] sm:$0xff] %v443
          %525 = vst [vmem:[%s270 + $0x40] sm:$0xff] %v447
          %526 = vst [vmem:[%s270 + $0x48] sm:$0xff] %v449
          %527 = vst [vmem:[%s270 + $0x50] sm:$0xff] %v453
          %528 = vst [vmem:[%s270 + $0x58] sm:$0xff] %v455
          %529 = vst [vmem:[%s270 + $0x60] sm:$0xff] %v459
          %530 = vst [vmem:[%s270 + $0x68] sm:$0xff] %v461
          %531 = vst [vmem:[%s270 + $0x70] sm:$0xff] %v465
          %532 = vst [vmem:[%s270 + $0x78] sm:$0xff] %v467
          %533 = vst [vmem:[%s270 + $0x80] sm:$0xff] %v471
          %534 = vst [vmem:[%s270 + $0x88] sm:$0xff] %v473
          %535 = vst [vmem:[%s270 + $0x90] sm:$0xff] %v477
          %536 = vst [vmem:[%s270 + $0x98] sm:$0xff] %v479
          %537 = vst [vmem:[%s270 + $0xa0] sm:$0xff] %v483
          %538 = vst [vmem:[%s270 + $0xa8] sm:$0xff] %v485
          %539 = vst [vmem:[%s270 + $0xb0] sm:$0xff] %v489
          %540 = vst [vmem:[%s270 + $0xb8] sm:$0xff] %v491
          %541 = vst [vmem:[%s270 + $0xc0] sm:$0xff] %v495
          %542 = vst [vmem:[%s270 + $0xc8] sm:$0xff] %v497
          %543 = vst [vmem:[%s270 + $0xd0] sm:$0xff] %v501
          %544 = vst [vmem:[%s270 + $0xd8] sm:$0xff] %v503
          %545 = vst [vmem:[%s270 + $0xe0] sm:$0xff] %v507
          %546 = vst [vmem:[%s270 + $0xe8] sm:$0xff] %v509
          %547 = vst [vmem:[%s270 + $0xf0] sm:$0xff] %v513
          %548 = vst [vmem:[%s270 + $0xf8] sm:$0xff] %v515
        $region44: #{tpu_custom_call.1} parent=35 // pred_fallthru
          _
        %p549 = scmp.eq.s32.totalorder %s307, 1
        // Predicated region
        $region45: #{tpu_custom_call.1} parent=35 // pred_check
          %p550 = pneg %p549
        $region46: #{tpu_custom_call.1} parent=35 // pred_check_branch
          %552 = sbr.rel (%p550) target = $region48
        $region47: #{tpu_custom_call.1} parent=35 // pred_region
          %s553 = scalar_lea.vmem [#allocation6], 256
          %v554 = vld [vmem:[%s553] sm:$0xff]
          %v555 = vld [vmem:[%s553 + $0x8] sm:$0xff]
          %v556 = vld [vmem:[%s553 + $0x10] sm:$0xff]
          %v557 = vld [vmem:[%s553 + $0x18] sm:$0xff]
          %v558 = vld [vmem:[%s553 + $0x20] sm:$0xff]
          %v559 = vld [vmem:[%s553 + $0x28] sm:$0xff]
          %v560 = vld [vmem:[%s553 + $0x30] sm:$0xff]
          %v561 = vld [vmem:[%s553 + $0x38] sm:$0xff]
          %v562 = vld [vmem:[%s553 + $0x40] sm:$0xff]
          %v563 = vld [vmem:[%s553 + $0x48] sm:$0xff]
          %v564 = vld [vmem:[%s553 + $0x50] sm:$0xff]
          %v565 = vld [vmem:[%s553 + $0x58] sm:$0xff]
          %v566 = vld [vmem:[%s553 + $0x60] sm:$0xff]
          %v567 = vld [vmem:[%s553 + $0x68] sm:$0xff]
          %v568 = vld [vmem:[%s553 + $0x70] sm:$0xff]
          %v569 = vld [vmem:[%s553 + $0x78] sm:$0xff]
          %v570 = vld [vmem:[%s553 + $0x80] sm:$0xff]
          %v571 = vld [vmem:[%s553 + $0x88] sm:$0xff]
          %v572 = vld [vmem:[%s553 + $0x90] sm:$0xff]
          %v573 = vld [vmem:[%s553 + $0x98] sm:$0xff]
          %v574 = vld [vmem:[%s553 + $0xa0] sm:$0xff]
          %v575 = vld [vmem:[%s553 + $0xa8] sm:$0xff]
          %v576 = vld [vmem:[%s553 + $0xb0] sm:$0xff]
          %v577 = vld [vmem:[%s553 + $0xb8] sm:$0xff]
          %v578 = vld [vmem:[%s553 + $0xc0] sm:$0xff]
          %v579 = vld [vmem:[%s553 + $0xc8] sm:$0xff]
          %v580 = vld [vmem:[%s553 + $0xd0] sm:$0xff]
          %v581 = vld [vmem:[%s553 + $0xd8] sm:$0xff]
          %v582 = vld [vmem:[%s553 + $0xe0] sm:$0xff]
          %v583 = vld [vmem:[%s553 + $0xe8] sm:$0xff]
          %v584 = vld [vmem:[%s553 + $0xf0] sm:$0xff]
          %v585 = vld [vmem:[%s553 + $0xf8] sm:$0xff]
          %s586 = scalar_lea.vmem %s287, 2
          %v587 = vld [vmem:[%s586] sm:$0x3]
          %v589 = vlaneseq
          %v590 = vshrl.u32 %v589, 7
          %v591 = vsub.s32 0, %v590
          %v592 = vrot.slane %v587, %v591
          %v593 = vlaneseq
          %v594 = vshrl.u32 %v593, 7
          %v595 = vsub.s32 1, %v594
          %v596 = vrot.slane %v587, %v595
          %599 = vmatprep.subr.mxu0 %v555
          %600 = vmatpush1.msra.mxu0 %v554
          %601 = vmatprep.subr.mxu0 %v557
          %602 = vmatpush1.msra.mxu0 %v556
          %603 = vmatprep.subr.mxu0 %v559
          %604 = vmatpush1.msra.mxu0 %v558
          %605 = vmatprep.subr.mxu0 %v561
          %606 = vmatpush1.msra.mxu0 %v560
          %607 = vmatprep.subr.mxu0 %v563
          %608 = vmatpush1.msra.mxu0 %v562
          %609 = vmatprep.subr.mxu0 %v565
          %610 = vmatpush1.msra.mxu0 %v564
          %611 = vmatprep.subr.mxu0 %v567
          %612 = vmatpush1.msra.mxu0 %v566
          %613 = vmatprep.subr.mxu0 %v569
          %614 = vmatpush1.msra.mxu0 %v568
          %615 = vmatprep.subr.mxu0 %v571
          %616 = vmatpush1.msra.mxu0 %v570
          %617 = vmatprep.subr.mxu0 %v573
          %618 = vmatpush1.msra.mxu0 %v572
          %619 = vmatprep.subr.mxu0 %v575
          %620 = vmatpush1.msra.mxu0 %v574
          %621 = vmatprep.subr.mxu0 %v577
          %622 = vmatpush1.msra.mxu0 %v576
          %623 = vmatprep.subr.mxu0 %v579
          %624 = vmatpush1.msra.mxu0 %v578
          %625 = vmatprep.subr.mxu0 %v581
          %626 = vmatpush1.msra.mxu0 %v580
          %627 = vmatprep.subr.mxu0 %v583
          %628 = vmatpush1.msra.mxu0 %v582
          %629 = vmatprep.subr.mxu0 %v585
          %630 = vmatpush1.msra.mxu0 %v584
          %631 = vmatprep.subr.mxu0 0.0
          %632 = vmatpush1.msra.mxu0 0.0
          %633 = vmatprep.subr.mxu0 0.0
          %634 = vmatpush1.msra.mxu0 0.0
          %635 = vmatprep.subr.mxu0 0.0
          %636 = vmatpush1.msra.mxu0 0.0
          %637 = vmatprep.subr.mxu0 0.0
          %638 = vmatpush1.msra.mxu0 0.0
          %639 = vmatprep.subr.mxu0 0.0
          %640 = vmatpush1.msra.mxu0 0.0
          %641 = vmatprep.subr.mxu0 0.0
          %642 = vmatpush1.msra.mxu0 0.0
          %643 = vmatprep.subr.mxu0 0.0
          %644 = vmatpush1.msra.mxu0 0.0
          %645 = vmatprep.subr.mxu0 0.0
          %646 = vmatpush1.msra.mxu0 0.0
          %647 = vmatprep.subr.mxu0 0.0
          %648 = vmatpush1.msra.mxu0 0.0
          %649 = vmatprep.subr.mxu0 0.0
          %650 = vmatpush1.msra.mxu0 0.0
          %651 = vmatprep.subr.mxu0 0.0
          %652 = vmatpush1.msra.mxu0 0.0
          %653 = vmatprep.subr.mxu0 0.0
          %654 = vmatpush1.msra.mxu0 0.0
          %655 = vmatprep.subr.mxu0 0.0
          %656 = vmatpush1.msra.mxu0 0.0
          %657 = vmatprep.subr.mxu0 0.0
          %658 = vmatpush1.msra.mxu0 0.0
          %659 = vmatprep.subr.mxu0 0.0
          %660 = vmatpush1.msra.mxu0 0.0
          %661 = vmatprep.subr.mxu0 0.0
          %662 = vmatpush1.msra.mxu0 0.0
          %663 = vmatprep.mubr.f32.mxu0 0.0
          %664 = vmatmul.mubr.f32.gmra.mrb[0].mxu0 %v291
          %v665 = vpop.f32.mrb[0].mxu0
          %v666 = vadd.f32 %v592, %v665
          %v667 = vpop.f32.mrb[0].mxu0
          %v668 = vadd.f32 %v596, %v667
          %669 = vmatprep.mubr.f32.mxu0 0.0
          %670 = vmatmul.mubr.f32.gmra.mrb[0].mxu0 %v292
          %v671 = vpop.f32.mrb[0].mxu0
          %v672 = vadd.f32 %v592, %v671
          %v673 = vpop.f32.mrb[0].mxu0
          %v674 = vadd.f32 %v596, %v673
          %675 = vmatprep.mubr.f32.mxu0 0.0
          %676 = vmatmul.mubr.f32.gmra.mrb[0].mxu0 %v293
          %v677 = vpop.f32.mrb[0].mxu0
          %v678 = vadd.f32 %v592, %v677
          %v679 = vpop.f32.mrb[0].mxu0
          %v680 = vadd.f32 %v596, %v679
          %681 = vmatprep.mubr.f32.mxu0 0.0
          %682 = vmatmul.mubr.f32.gmra.mrb[0].mxu0 %v294
          %v683 = vpop.f32.mrb[0].mxu0
          %v684 = vadd.f32 %v592, %v683
          %v685 = vpop.f32.mrb[0].mxu0
          %v686 = vadd.f32 %v596, %v685
          %687 = vmatprep.mubr.f32.mxu0 0.0
          %688 = vmatmul.mubr.f32.gmra.mrb[0].mxu0 %v295
          %v689 = vpop.f32.mrb[0].mxu0
          %v690 = vadd.f32 %v592, %v689
          %v691 = vpop.f32.mrb[0].mxu0
          %v692 = vadd.f32 %v596, %v691
          %693 = vmatprep.mubr.f32.mxu0 0.0
          %694 = vmatmul.mubr.f32.gmra.mrb[0].mxu0 %v296
          %v695 = vpop.f32.mrb[0].mxu0
          %v696 = vadd.f32 %v592, %v695
          %v697 = vpop.f32.mrb[0].mxu0
          %v698 = vadd.f32 %v596, %v697
          %699 = vmatprep.mubr.f32.mxu0 0.0
          %700 = vmatmul.mubr.f32.gmra.mrb[0].mxu0 %v297
          %v701 = vpop.f32.mrb[0].mxu0
          %v702 = vadd.f32 %v592, %v701
          %v703 = vpop.f32.mrb[0].mxu0
          %v704 = vadd.f32 %v596, %v703
          %705 = vmatprep.mubr.f32.mxu0 0.0
          %706 = vmatmul.mubr.f32.gmra.mrb[0].mxu0 %v298
          %v707 = vpop.f32.mrb[0].mxu0
          %v708 = vadd.f32 %v592, %v707
          %v709 = vpop.f32.mrb[0].mxu0
          %v710 = vadd.f32 %v596, %v709
          %711 = vmatprep.mubr.f32.mxu0 0.0
          %712 = vmatmul.mubr.f32.gmra.mrb[0].mxu0 %v299
          %v713 = vpop.f32.mrb[0].mxu0
          %v714 = vadd.f32 %v592, %v713
          %v715 = vpop.f32.mrb[0].mxu0
          %v716 = vadd.f32 %v596, %v715
          %717 = vmatprep.mubr.f32.mxu0 0.0
          %718 = vmatmul.mubr.f32.gmra.mrb[0].mxu0 %v300
          %v719 = vpop.f32.mrb[0].mxu0
          %v720 = vadd.f32 %v592, %v719
          %v721 = vpop.f32.mrb[0].mxu0
          %v722 = vadd.f32 %v596, %v721
          %723 = vmatprep.mubr.f32.mxu0 0.0
          %724 = vmatmul.mubr.f32.gmra.mrb[0].mxu0 %v301
          %v725 = vpop.f32.mrb[0].mxu0
          %v726 = vadd.f32 %v592, %v725
          %v727 = vpop.f32.mrb[0].mxu0
          %v728 = vadd.f32 %v596, %v727
          %729 = vmatprep.mubr.f32.mxu0 0.0
          %730 = vmatmul.mubr.f32.gmra.mrb[0].mxu0 %v302
          %v731 = vpop.f32.mrb[0].mxu0
          %v732 = vadd.f32 %v592, %v731
          %v733 = vpop.f32.mrb[0].mxu0
          %v734 = vadd.f32 %v596, %v733
          %735 = vmatprep.mubr.f32.mxu0 0.0
          %736 = vmatmul.mubr.f32.gmra.mrb[0].mxu0 %v303
          %v737 = vpop.f32.mrb[0].mxu0
          %v738 = vadd.f32 %v592, %v737
          %v739 = vpop.f32.mrb[0].mxu0
          %v740 = vadd.f32 %v596, %v739
          %741 = vmatprep.mubr.f32.mxu0 0.0
          %742 = vmatmul.mubr.f32.gmra.mrb[0].mxu0 %v304
          %v743 = vpop.f32.mrb[0].mxu0
          %v744 = vadd.f32 %v592, %v743
          %v745 = vpop.f32.mrb[0].mxu0
          %v746 = vadd.f32 %v596, %v745
          %747 = vmatprep.mubr.f32.mxu0 0.0
          %748 = vmatmul.mubr.f32.gmra.mrb[0].mxu0 %v305
          %v749 = vpop.f32.mrb[0].mxu0
          %v750 = vadd.f32 %v592, %v749
          %v751 = vpop.f32.mrb[0].mxu0
          %v752 = vadd.f32 %v596, %v751
          %753 = vmatprep.mubr.f32.mxu0 0.0
          %754 = vmatmul.mubr.f32.gmra.mrb[0].mxu0 %v306
          %v755 = vpop.f32.mrb[0].mxu0
          %v756 = vadd.f32 %v592, %v755
          %v757 = vpop.f32.mrb[0].mxu0
          %v758 = vadd.f32 %v596, %v757
          %759 = vdwg.mxu0
          %760 = vst [vmem:[%s270] sm:$0xff] %v666
          %761 = vst [vmem:[%s270 + $0x8] sm:$0xff] %v668
          %762 = vst [vmem:[%s270 + $0x10] sm:$0xff] %v672
          %763 = vst [vmem:[%s270 + $0x18] sm:$0xff] %v674
          %764 = vst [vmem:[%s270 + $0x20] sm:$0xff] %v678
          %765 = vst [vmem:[%s270 + $0x28] sm:$0xff] %v680
          %766 = vst [vmem:[%s270 + $0x30] sm:$0xff] %v684
          %767 = vst [vmem:[%s270 + $0x38] sm:$0xff] %v686
          %768 = vst [vmem:[%s270 + $0x40] sm:$0xff] %v690
          %769 = vst [vmem:[%s270 + $0x48] sm:$0xff] %v692
          %770 = vst [vmem:[%s270 + $0x50] sm:$0xff] %v696
          %771 = vst [vmem:[%s270 + $0x58] sm:$0xff] %v698
          %772 = vst [vmem:[%s270 + $0x60] sm:$0xff] %v702
          %773 = vst [vmem:[%s270 + $0x68] sm:$0xff] %v704
          %774 = vst [vmem:[%s270 + $0x70] sm:$0xff] %v708
          %775 = vst [vmem:[%s270 + $0x78] sm:$0xff] %v710
          %776 = vst [vmem:[%s270 + $0x80] sm:$0xff] %v714
          %777 = vst [vmem:[%s270 + $0x88] sm:$0xff] %v716
          %778 = vst [vmem:[%s270 + $0x90] sm:$0xff] %v720
          %779 = vst [vmem:[%s270 + $0x98] sm:$0xff] %v722
          %780 = vst [vmem:[%s270 + $0xa0] sm:$0xff] %v726
          %781 = vst [vmem:[%s270 + $0xa8] sm:$0xff] %v728
          %782 = vst [vmem:[%s270 + $0xb0] sm:$0xff] %v732
          %783 = vst [vmem:[%s270 + $0xb8] sm:$0xff] %v734
          %784 = vst [vmem:[%s270 + $0xc0] sm:$0xff] %v738
          %785 = vst [vmem:[%s270 + $0xc8] sm:$0xff] %v740
          %786 = vst [vmem:[%s270 + $0xd0] sm:$0xff] %v744
          %787 = vst [vmem:[%s270 + $0xd8] sm:$0xff] %v746
          %788 = vst [vmem:[%s270 + $0xe0] sm:$0xff] %v750
          %789 = vst [vmem:[%s270 + $0xe8] sm:$0xff] %v752
          %790 = vst [vmem:[%s270 + $0xf0] sm:$0xff] %v756
          %791 = vst [vmem:[%s270 + $0xf8] sm:$0xff] %v758
        $region48: #{tpu_custom_call.1} parent=35 // pred_fallthru
          _
        %p792 = scmp.eq.s32.totalorder %s307, 2
        // Predicated region
        $region49: #{tpu_custom_call.1} parent=35 // pred_check
          %p793 = pneg %p792
        $region50: #{tpu_custom_call.1} parent=35 // pred_check_branch
          %795 = sbr.rel (%p793) target = $region52
        $region51: #{tpu_custom_call.1} parent=35 // pred_region
          %s796 = scalar_lea.vmem [#allocation6], 512
          %v797 = vld [vmem:[%s796] sm:$0xff]
          %v798 = vld [vmem:[%s796 + $0x8] sm:$0xff]
          %v799 = vld [vmem:[%s796 + $0x10] sm:$0xff]
          %v800 = vld [vmem:[%s796 + $0x18] sm:$0xff]
          %v801 = vld [vmem:[%s796 + $0x20] sm:$0xff]
          %v802 = vld [vmem:[%s796 + $0x28] sm:$0xff]
          %v803 = vld [vmem:[%s796 + $0x30] sm:$0xff]
          %v804 = vld [vmem:[%s796 + $0x38] sm:$0xff]
          %v805 = vld [vmem:[%s796 + $0x40] sm:$0xff]
          %v806 = vld [vmem:[%s796 + $0x48] sm:$0xff]
          %v807 = vld [vmem:[%s796 + $0x50] sm:$0xff]
          %v808 = vld [vmem:[%s796 + $0x58] sm:$0xff]
          %v809 = vld [vmem:[%s796 + $0x60] sm:$0xff]
          %v810 = vld [vmem:[%s796 + $0x68] sm:$0xff]
          %v811 = vld [vmem:[%s796 + $0x70] sm:$0xff]
          %v812 = vld [vmem:[%s796 + $0x78] sm:$0xff]
          %v813 = vld [vmem:[%s796 + $0x80] sm:$0xff]
          %v814 = vld [vmem:[%s796 + $0x88] sm:$0xff]
          %v815 = vld [vmem:[%s796 + $0x90] sm:$0xff]
          %v816 = vld [vmem:[%s796 + $0x98] sm:$0xff]
          %v817 = vld [vmem:[%s796 + $0xa0] sm:$0xff]
          %v818 = vld [vmem:[%s796 + $0xa8] sm:$0xff]
          %v819 = vld [vmem:[%s796 + $0xb0] sm:$0xff]
          %v820 = vld [vmem:[%s796 + $0xb8] sm:$0xff]
          %v821 = vld [vmem:[%s796 + $0xc0] sm:$0xff]
          %v822 = vld [vmem:[%s796 + $0xc8] sm:$0xff]
          %v823 = vld [vmem:[%s796 + $0xd0] sm:$0xff]
          %v824 = vld [vmem:[%s796 + $0xd8] sm:$0xff]
          %v825 = vld [vmem:[%s796 + $0xe0] sm:$0xff]
          %v826 = vld [vmem:[%s796 + $0xe8] sm:$0xff]
          %v827 = vld [vmem:[%s796 + $0xf0] sm:$0xff]
          %v828 = vld [vmem:[%s796 + $0xf8] sm:$0xff]
          %s829 = scalar_lea.vmem %s287, 4
          %v830 = vld [vmem:[%s829] sm:$0x3]
          %v832 = vlaneseq
          %v833 = vshrl.u32 %v832, 7
          %v834 = vsub.s32 0, %v833
          %v835 = vrot.slane %v830, %v834
          %v836 = vlaneseq
          %v837 = vshrl.u32 %v836, 7
          %v838 = vsub.s32 1, %v837
          %v839 = vrot.slane %v830, %v838
          %842 = vmatprep.subr.mxu0 %v798
          %843 = vmatpush1.msra.mxu0 %v797
          %844 = vmatprep.subr.mxu0 %v800
          %845 = vmatpush1.msra.mxu0 %v799
          %846 = vmatprep.subr.mxu0 %v802
          %847 = vmatpush1.msra.mxu0 %v801
          %848 = vmatprep.subr.mxu0 %v804
          %849 = vmatpush1.msra.mxu0 %v803
          %850 = vmatprep.subr.mxu0 %v806
          %851 = vmatpush1.msra.mxu0 %v805
          %852 = vmatprep.subr.mxu0 %v808
          %853 = vmatpush1.msra.mxu0 %v807
          %854 = vmatprep.subr.mxu0 %v810
          %855 = vmatpush1.msra.mxu0 %v809
          %856 = vmatprep.subr.mxu0 %v812
          %857 = vmatpush1.msra.mxu0 %v811
          %858 = vmatprep.subr.mxu0 %v814
          %859 = vmatpush1.msra.mxu0 %v813
          %860 = vmatprep.subr.mxu0 %v816
          %861 = vmatpush1.msra.mxu0 %v815
          %862 = vmatprep.subr.mxu0 %v818
          %863 = vmatpush1.msra.mxu0 %v817
          %864 = vmatprep.subr.mxu0 %v820
          %865 = vmatpush1.msra.mxu0 %v819
          %866 = vmatprep.subr.mxu0 %v822
          %867 = vmatpush1.msra.mxu0 %v821
          %868 = vmatprep.subr.mxu0 %v824
          %869 = vmatpush1.msra.mxu0 %v823
          %870 = vmatprep.subr.mxu0 %v826
          %871 = vmatpush1.msra.mxu0 %v825
          %872 = vmatprep.subr.mxu0 %v828
          %873 = vmatpush1.msra.mxu0 %v827
          %874 = vmatprep.subr.mxu0 0.0
          %875 = vmatpush1.msra.mxu0 0.0
          %876 = vmatprep.subr.mxu0 0.0
          %877 = vmatpush1.msra.mxu0 0.0
          %878 = vmatprep.subr.mxu0 0.0
          %879 = vmatpush1.msra.mxu0 0.0
          %880 = vmatprep.subr.mxu0 0.0
          %881 = vmatpush1.msra.mxu0 0.0
          %882 = vmatprep.subr.mxu0 0.0
          %883 = vmatpush1.msra.mxu0 0.0
          %884 = vmatprep.subr.mxu0 0.0
          %885 = vmatpush1.msra.mxu0 0.0
          %886 = vmatprep.subr.mxu0 0.0
          %887 = vmatpush1.msra.mxu0 0.0
          %888 = vmatprep.subr.mxu0 0.0
          %889 = vmatpush1.msra.mxu0 0.0
          %890 = vmatprep.subr.mxu0 0.0
          %891 = vmatpush1.msra.mxu0 0.0
          %892 = vmatprep.subr.mxu0 0.0
          %893 = vmatpush1.msra.mxu0 0.0
          %894 = vmatprep.subr.mxu0 0.0
          %895 = vmatpush1.msra.mxu0 0.0
          %896 = vmatprep.subr.mxu0 0.0
          %897 = vmatpush1.msra.mxu0 0.0
          %898 = vmatprep.subr.mxu0 0.0
          %899 = vmatpush1.msra.mxu0 0.0
          %900 = vmatprep.subr.mxu0 0.0
          %901 = vmatpush1.msra.mxu0 0.0
          %902 = vmatprep.subr.mxu0 0.0
          %903 = vmatpush1.msra.mxu0 0.0
          %904 = vmatprep.subr.mxu0 0.0
          %905 = vmatpush1.msra.mxu0 0.0
          %906 = vmatprep.mubr.f32.mxu0 0.0
          %907 = vmatmul.mubr.f32.gmra.mrb[0].mxu0 %v291
          %v908 = vpop.f32.mrb[0].mxu0
          %v909 = vadd.f32 %v835, %v908
          %v910 = vpop.f32.mrb[0].mxu0
          %v911 = vadd.f32 %v839, %v910
          %912 = vmatprep.mubr.f32.mxu0 0.0
          %913 = vmatmul.mubr.f32.gmra.mrb[0].mxu0 %v292
          %v914 = vpop.f32.mrb[0].mxu0
          %v915 = vadd.f32 %v835, %v914
          %v916 = vpop.f32.mrb[0].mxu0
          %v917 = vadd.f32 %v839, %v916
          %918 = vmatprep.mubr.f32.mxu0 0.0
          %919 = vmatmul.mubr.f32.gmra.mrb[0].mxu0 %v293
          %v920 = vpop.f32.mrb[0].mxu0
          %v921 = vadd.f32 %v835, %v920
          %v922 = vpop.f32.mrb[0].mxu0
          %v923 = vadd.f32 %v839, %v922
          %924 = vmatprep.mubr.f32.mxu0 0.0
          %925 = vmatmul.mubr.f32.gmra.mrb[0].mxu0 %v294
          %v926 = vpop.f32.mrb[0].mxu0
          %v927 = vadd.f32 %v835, %v926
          %v928 = vpop.f32.mrb[0].mxu0
          %v929 = vadd.f32 %v839, %v928
          %930 = vmatprep.mubr.f32.mxu0 0.0
          %931 = vmatmul.mubr.f32.gmra.mrb[0].mxu0 %v295
          %v932 = vpop.f32.mrb[0].mxu0
          %v933 = vadd.f32 %v835, %v932
          %v934 = vpop.f32.mrb[0].mxu0
          %v935 = vadd.f32 %v839, %v934
          %936 = vmatprep.mubr.f32.mxu0 0.0
          %937 = vmatmul.mubr.f32.gmra.mrb[0].mxu0 %v296
          %v938 = vpop.f32.mrb[0].mxu0
          %v939 = vadd.f32 %v835, %v938
          %v940 = vpop.f32.mrb[0].mxu0
          %v941 = vadd.f32 %v839, %v940
          %942 = vmatprep.mubr.f32.mxu0 0.0
          %943 = vmatmul.mubr.f32.gmra.mrb[0].mxu0 %v297
          %v944 = vpop.f32.mrb[0].mxu0
          %v945 = vadd.f32 %v835, %v944
          %v946 = vpop.f32.mrb[0].mxu0
          %v947 = vadd.f32 %v839, %v946
          %948 = vmatprep.mubr.f32.mxu0 0.0
          %949 = vmatmul.mubr.f32.gmra.mrb[0].mxu0 %v298
          %v950 = vpop.f32.mrb[0].mxu0
          %v951 = vadd.f32 %v835, %v950
          %v952 = vpop.f32.mrb[0].mxu0
          %v953 = vadd.f32 %v839, %v952
          %954 = vmatprep.mubr.f32.mxu0 0.0
          %955 = vmatmul.mubr.f32.gmra.mrb[0].mxu0 %v299
          %v956 = vpop.f32.mrb[0].mxu0
          %v957 = vadd.f32 %v835, %v956
          %v958 = vpop.f32.mrb[0].mxu0
          %v959 = vadd.f32 %v839, %v958
          %960 = vmatprep.mubr.f32.mxu0 0.0
          %961 = vmatmul.mubr.f32.gmra.mrb[0].mxu0 %v300
          %v962 = vpop.f32.mrb[0].mxu0
          %v963 = vadd.f32 %v835, %v962
          %v964 = vpop.f32.mrb[0].mxu0
          %v965 = vadd.f32 %v839, %v964
          %966 = vmatprep.mubr.f32.mxu0 0.0
          %967 = vmatmul.mubr.f32.gmra.mrb[0].mxu0 %v301
          %v968 = vpop.f32.mrb[0].mxu0
          %v969 = vadd.f32 %v835, %v968
          %v970 = vpop.f32.mrb[0].mxu0
          %v971 = vadd.f32 %v839, %v970
          %972 = vmatprep.mubr.f32.mxu0 0.0
          %973 = vmatmul.mubr.f32.gmra.mrb[0].mxu0 %v302
          %v974 = vpop.f32.mrb[0].mxu0
          %v975 = vadd.f32 %v835, %v974
          %v976 = vpop.f32.mrb[0].mxu0
          %v977 = vadd.f32 %v839, %v976
          %978 = vmatprep.mubr.f32.mxu0 0.0
          %979 = vmatmul.mubr.f32.gmra.mrb[0].mxu0 %v303
          %v980 = vpop.f32.mrb[0].mxu0
          %v981 = vadd.f32 %v835, %v980
          %v982 = vpop.f32.mrb[0].mxu0
          %v983 = vadd.f32 %v839, %v982
          %984 = vmatprep.mubr.f32.mxu0 0.0
          %985 = vmatmul.mubr.f32.gmra.mrb[0].mxu0 %v304
          %v986 = vpop.f32.mrb[0].mxu0
          %v987 = vadd.f32 %v835, %v986
          %v988 = vpop.f32.mrb[0].mxu0
          %v989 = vadd.f32 %v839, %v988
          %990 = vmatprep.mubr.f32.mxu0 0.0
          %991 = vmatmul.mubr.f32.gmra.mrb[0].mxu0 %v305
          %v992 = vpop.f32.mrb[0].mxu0
          %v993 = vadd.f32 %v835, %v992
          %v994 = vpop.f32.mrb[0].mxu0
          %v995 = vadd.f32 %v839, %v994
          %996 = vmatprep.mubr.f32.mxu0 0.0
          %997 = vmatmul.mubr.f32.gmra.mrb[0].mxu0 %v306
          %v998 = vpop.f32.mrb[0].mxu0
          %v999 = vadd.f32 %v835, %v998
          %v1000 = vpop.f32.mrb[0].mxu0
          %v1001 = vadd.f32 %v839, %v1000
          %1002 = vdwg.mxu0
          %1003 = vst [vmem:[%s270] sm:$0xff] %v909
          %1004 = vst [vmem:[%s270 + $0x8] sm:$0xff] %v911
          %1005 = vst [vmem:[%s270 + $0x10] sm:$0xff] %v915
          %1006 = vst [vmem:[%s270 + $0x18] sm:$0xff] %v917
          %1007 = vst [vmem:[%s270 + $0x20] sm:$0xff] %v921
          %1008 = vst [vmem:[%s270 + $0x28] sm:$0xff] %v923
          %1009 = vst [vmem:[%s270 + $0x30] sm:$0xff] %v927
          %1010 = vst [vmem:[%s270 + $0x38] sm:$0xff] %v929
          %1011 = vst [vmem:[%s270 + $0x40] sm:$0xff] %v933
          %1012 = vst [vmem:[%s270 + $0x48] sm:$0xff] %v935
          %1013 = vst [vmem:[%s270 + $0x50] sm:$0xff] %v939
          %1014 = vst [vmem:[%s270 + $0x58] sm:$0xff] %v941
          %1015 = vst [vmem:[%s270 + $0x60] sm:$0xff] %v945
          %1016 = vst [vmem:[%s270 + $0x68] sm:$0xff] %v947
          %1017 = vst [vmem:[%s270 + $0x70] sm:$0xff] %v951
          %1018 = vst [vmem:[%s270 + $0x78] sm:$0xff] %v953
          %1019 = vst [vmem:[%s270 + $0x80] sm:$0xff] %v957
          %1020 = vst [vmem:[%s270 + $0x88] sm:$0xff] %v959
          %1021 = vst [vmem:[%s270 + $0x90] sm:$0xff] %v963
          %1022 = vst [vmem:[%s270 + $0x98] sm:$0xff] %v965
          %1023 = vst [vmem:[%s270 + $0xa0] sm:$0xff] %v969
          %1024 = vst [vmem:[%s270 + $0xa8] sm:$0xff] %v971
          %1025 = vst [vmem:[%s270 + $0xb0] sm:$0xff] %v975
          %1026 = vst [vmem:[%s270 + $0xb8] sm:$0xff] %v977
          %1027 = vst [vmem:[%s270 + $0xc0] sm:$0xff] %v981
          %1028 = vst [vmem:[%s270 + $0xc8] sm:$0xff] %v983
          %1029 = vst [vmem:[%s270 + $0xd0] sm:$0xff] %v987
          %1030 = vst [vmem:[%s270 + $0xd8] sm:$0xff] %v989
          %1031 = vst [vmem:[%s270 + $0xe0] sm:$0xff] %v993
          %1032 = vst [vmem:[%s270 + $0xe8] sm:$0xff] %v995
          %1033 = vst [vmem:[%s270 + $0xf0] sm:$0xff] %v999
          %1034 = vst [vmem:[%s270 + $0xf8] sm:$0xff] %v1001
        $region52: #{tpu_custom_call.1} parent=35 // pred_fallthru
          _
        %p1035 = scmp.lt.s32.totalorder %s307, 0
        // Predicated region
        $region53: #{tpu_custom_call.1} parent=35 // pred_check
          %p1036 = pneg %p1035
        $region54: #{tpu_custom_call.1} parent=35 // pred_check_branch
          %1038 = sbr.rel (%p1036) target = $region56
        $region55: #{tpu_custom_call.1} parent=35 // pred_region
          %v1039 = vld [vmem:[%s275] sm:$0xff]
          %v1040 = vld [vmem:[%s275 + $0x8] sm:$0xff]
          %v1041 = vld [vmem:[%s275 + $0x10] sm:$0xff]
          %v1042 = vld [vmem:[%s275 + $0x18] sm:$0xff]
          %v1043 = vld [vmem:[%s275 + $0x20] sm:$0xff]
          %v1044 = vld [vmem:[%s275 + $0x28] sm:$0xff]
          %v1045 = vld [vmem:[%s275 + $0x30] sm:$0xff]
          %v1046 = vld [vmem:[%s275 + $0x38] sm:$0xff]
          %v1047 = vld [vmem:[%s275 + $0x40] sm:$0xff]
          %v1048 = vld [vmem:[%s275 + $0x48] sm:$0xff]
          %v1049 = vld [vmem:[%s275 + $0x50] sm:$0xff]
          %v1050 = vld [vmem:[%s275 + $0x58] sm:$0xff]
          %v1051 = vld [vmem:[%s275 + $0x60] sm:$0xff]
          %v1052 = vld [vmem:[%s275 + $0x68] sm:$0xff]
          %v1053 = vld [vmem:[%s275 + $0x70] sm:$0xff]
          %v1054 = vld [vmem:[%s275 + $0x78] sm:$0xff]
          %1055 = vst [vmem:[#allocation2] sm:$0xff] 0.0
          %1056 = vst [vmem:[#allocation2 + $0x8] sm:$0xff] 0.0
          %1057 = vst [vmem:[#allocation2 + $0x10] sm:$0xff] 0.0
          %1058 = vst [vmem:[#allocation2 + $0x18] sm:$0xff] 0.0
          %1059 = vst [vmem:[#allocation2 + $0x20] sm:$0xff] 0.0
          %1060 = vst [vmem:[#allocation2 + $0x28] sm:$0xff] 0.0
          %1061 = vst [vmem:[#allocation2 + $0x30] sm:$0xff] 0.0
          %1062 = vst [vmem:[#allocation2 + $0x38] sm:$0xff] 0.0
          %1063 = vst [vmem:[#allocation2 + $0x40] sm:$0xff] 0.0
          %1064 = vst [vmem:[#allocation2 + $0x48] sm:$0xff] 0.0
          %1065 = vst [vmem:[#allocation2 + $0x50] sm:$0xff] 0.0
          %1066 = vst [vmem:[#allocation2 + $0x58] sm:$0xff] 0.0
          %1067 = vst [vmem:[#allocation2 + $0x60] sm:$0xff] 0.0
          %1068 = vst [vmem:[#allocation2 + $0x68] sm:$0xff] 0.0
          %1069 = vst [vmem:[#allocation2 + $0x70] sm:$0xff] 0.0
          %1070 = vst [vmem:[#allocation2 + $0x78] sm:$0xff] 0.0
          %1071 = vst [vmem:[#allocation2 + $0x80] sm:$0xff] 0.0
          %1072 = vst [vmem:[#allocation2 + $0x88] sm:$0xff] 0.0
          %1073 = vst [vmem:[#allocation2 + $0x90] sm:$0xff] 0.0
          %1074 = vst [vmem:[#allocation2 + $0x98] sm:$0xff] 0.0
          %1075 = vst [vmem:[#allocation2 + $0xa0] sm:$0xff] 0.0
          %1076 = vst [vmem:[#allocation2 + $0xa8] sm:$0xff] 0.0
          %1077 = vst [vmem:[#allocation2 + $0xb0] sm:$0xff] 0.0
          %1078 = vst [vmem:[#allocation2 + $0xb8] sm:$0xff] 0.0
          %1079 = vst [vmem:[#allocation2 + $0xc0] sm:$0xff] 0.0
          %1080 = vst [vmem:[#allocation2 + $0xc8] sm:$0xff] 0.0
          %1081 = vst [vmem:[#allocation2 + $0xd0] sm:$0xff] 0.0
          %1082 = vst [vmem:[#allocation2 + $0xd8] sm:$0xff] 0.0
          %1083 = vst [vmem:[#allocation2 + $0xe0] sm:$0xff] 0.0
          %1084 = vst [vmem:[#allocation2 + $0xe8] sm:$0xff] 0.0
          %1085 = vst [vmem:[#allocation2 + $0xf0] sm:$0xff] 0.0
          %1086 = vst [vmem:[#allocation2 + $0xf8] sm:$0xff] 0.0
          %s1087 = sld [smem:[#allocation4 + %s36]]
          %p1088 = scmp.ne.s32.totalorder %s1087, 0
          // Predicated region
          $region57: #{tpu_custom_call.1} parent=55 // pred_check
            %p1089 = pneg %p1088
          $region58: #{tpu_custom_call.1} parent=55 // pred_check_branch
            %1091 = sbr.rel (%p1089) target = $region60
          $region59: #{tpu_custom_call.1} parent=55 // pred_region
            %v1092 = vld [vmem:[#allocation6] sm:$0xff]
            %v1093 = vld [vmem:[#allocation6 + $0x8] sm:$0xff]
            %v1094 = vld [vmem:[#allocation6 + $0x10] sm:$0xff]
            %v1095 = vld [vmem:[#allocation6 + $0x18] sm:$0xff]
            %v1096 = vld [vmem:[#allocation6 + $0x20] sm:$0xff]
            %v1097 = vld [vmem:[#allocation6 + $0x28] sm:$0xff]
            %v1098 = vld [vmem:[#allocation6 + $0x30] sm:$0xff]
            %v1099 = vld [vmem:[#allocation6 + $0x38] sm:$0xff]
            %v1100 = vld [vmem:[#allocation6 + $0x40] sm:$0xff]
            %v1101 = vld [vmem:[#allocation6 + $0x48] sm:$0xff]
            %v1102 = vld [vmem:[#allocation6 + $0x50] sm:$0xff]
            %v1103 = vld [vmem:[#allocation6 + $0x58] sm:$0xff]
            %v1104 = vld [vmem:[#allocation6 + $0x60] sm:$0xff]
            %v1105 = vld [vmem:[#allocation6 + $0x68] sm:$0xff]
            %v1106 = vld [vmem:[#allocation6 + $0x70] sm:$0xff]
            %v1107 = vld [vmem:[#allocation6 + $0x78] sm:$0xff]
            %v1108 = vld [vmem:[#allocation6 + $0x80] sm:$0xff]
            %v1109 = vld [vmem:[#allocation6 + $0x88] sm:$0xff]
            %v1110 = vld [vmem:[#allocation6 + $0x90] sm:$0xff]
            %v1111 = vld [vmem:[#allocation6 + $0x98] sm:$0xff]
            %v1112 = vld [vmem:[#allocation6 + $0xa0] sm:$0xff]
            %v1113 = vld [vmem:[#allocation6 + $0xa8] sm:$0xff]
            %v1114 = vld [vmem:[#allocation6 + $0xb0] sm:$0xff]
            %v1115 = vld [vmem:[#allocation6 + $0xb8] sm:$0xff]
            %v1116 = vld [vmem:[#allocation6 + $0xc0] sm:$0xff]
            %v1117 = vld [vmem:[#allocation6 + $0xc8] sm:$0xff]
            %v1118 = vld [vmem:[#allocation6 + $0xd0] sm:$0xff]
            %v1119 = vld [vmem:[#allocation6 + $0xd8] sm:$0xff]
            %v1120 = vld [vmem:[#allocation6 + $0xe0] sm:$0xff]
            %v1121 = vld [vmem:[#allocation6 + $0xe8] sm:$0xff]
            %v1122 = vld [vmem:[#allocation6 + $0xf0] sm:$0xff]
            %v1123 = vld [vmem:[#allocation6 + $0xf8] sm:$0xff]
            %v1124 = vld [vmem:[%s287] sm:$0x3]
            %v1126 = vlaneseq
            %v1127 = vshrl.u32 %v1126, 7
            %v1128 = vsub.s32 0, %v1127
            %v1129 = vrot.slane %v1124, %v1128
            %v1130 = vlaneseq
            %v1131 = vshrl.u32 %v1130, 7
            %v1132 = vsub.s32 1, %v1131
            %v1133 = vrot.slane %v1124, %v1132
            %1136 = vmatprep.subr.mxu0 %v1093
            %1137 = vmatpush1.msra.mxu0 %v1092
            %1138 = vmatprep.subr.mxu0 %v1095
            %1139 = vmatpush1.msra.mxu0 %v1094
            %1140 = vmatprep.subr.mxu0 %v1097
            %1141 = vmatpush1.msra.mxu0 %v1096
            %1142 = vmatprep.subr.mxu0 %v1099
            %1143 = vmatpush1.msra.mxu0 %v1098
            %1144 = vmatprep.subr.mxu0 %v1101
            %1145 = vmatpush1.msra.mxu0 %v1100
            %1146 = vmatprep.subr.mxu0 %v1103
            %1147 = vmatpush1.msra.mxu0 %v1102
            %1148 = vmatprep.subr.mxu0 %v1105
            %1149 = vmatpush1.msra.mxu0 %v1104
            %1150 = vmatprep.subr.mxu0 %v1107
            %1151 = vmatpush1.msra.mxu0 %v1106
            %1152 = vmatprep.subr.mxu0 %v1109
            %1153 = vmatpush1.msra.mxu0 %v1108
            %1154 = vmatprep.subr.mxu0 %v1111
            %1155 = vmatpush1.msra.mxu0 %v1110
            %1156 = vmatprep.subr.mxu0 %v1113
            %1157 = vmatpush1.msra.mxu0 %v1112
            %1158 = vmatprep.subr.mxu0 %v1115
            %1159 = vmatpush1.msra.mxu0 %v1114
            %1160 = vmatprep.subr.mxu0 %v1117
            %1161 = vmatpush1.msra.mxu0 %v1116
            %1162 = vmatprep.subr.mxu0 %v1119
            %1163 = vmatpush1.msra.mxu0 %v1118
            %1164 = vmatprep.subr.mxu0 %v1121
            %1165 = vmatpush1.msra.mxu0 %v1120
            %1166 = vmatprep.subr.mxu0 %v1123
            %1167 = vmatpush1.msra.mxu0 %v1122
            %1168 = vmatprep.subr.mxu0 0.0
            %1169 = vmatpush1.msra.mxu0 0.0
            %1170 = vmatprep.subr.mxu0 0.0
            %1171 = vmatpush1.msra.mxu0 0.0
            %1172 = vmatprep.subr.mxu0 0.0
            %1173 = vmatpush1.msra.mxu0 0.0
            %1174 = vmatprep.subr.mxu0 0.0
            %1175 = vmatpush1.msra.mxu0 0.0
            %1176 = vmatprep.subr.mxu0 0.0
            %1177 = vmatpush1.msra.mxu0 0.0
            %1178 = vmatprep.subr.mxu0 0.0
            %1179 = vmatpush1.msra.mxu0 0.0
            %1180 = vmatprep.subr.mxu0 0.0
            %1181 = vmatpush1.msra.mxu0 0.0
            %1182 = vmatprep.subr.mxu0 0.0
            %1183 = vmatpush1.msra.mxu0 0.0
            %1184 = vmatprep.subr.mxu0 0.0
            %1185 = vmatpush1.msra.mxu0 0.0
            %1186 = vmatprep.subr.mxu0 0.0
            %1187 = vmatpush1.msra.mxu0 0.0
            %1188 = vmatprep.subr.mxu0 0.0
            %1189 = vmatpush1.msra.mxu0 0.0
            %1190 = vmatprep.subr.mxu0 0.0
            %1191 = vmatpush1.msra.mxu0 0.0
            %1192 = vmatprep.subr.mxu0 0.0
            %1193 = vmatpush1.msra.mxu0 0.0
            %1194 = vmatprep.subr.mxu0 0.0
            %1195 = vmatpush1.msra.mxu0 0.0
            %1196 = vmatprep.subr.mxu0 0.0
            %1197 = vmatpush1.msra.mxu0 0.0
            %1198 = vmatprep.subr.mxu0 0.0
            %1199 = vmatpush1.msra.mxu0 0.0
            %1200 = vmatprep.mubr.f32.mxu0 0.0
            %1201 = vmatmul.mubr.f32.gmra.mrb[0].mxu0 %v291
            %v1202 = vpop.f32.mrb[0].mxu0
            %v1203 = vadd.f32 %v1129, %v1202
            %v1204 = vpop.f32.mrb[0].mxu0
            %v1205 = vadd.f32 %v1133, %v1204
            %1206 = vmatprep.mubr.f32.mxu0 0.0
            %1207 = vmatmul.mubr.f32.gmra.mrb[0].mxu0 %v292
            %v1208 = vpop.f32.mrb[0].mxu0
            %v1209 = vadd.f32 %v1129, %v1208
            %v1210 = vpop.f32.mrb[0].mxu0
            %v1211 = vadd.f32 %v1133, %v1210
            %1212 = vmatprep.mubr.f32.mxu0 0.0
            %1213 = vmatmul.mubr.f32.gmra.mrb[0].mxu0 %v293
            %v1214 = vpop.f32.mrb[0].mxu0
            %v1215 = vadd.f32 %v1129, %v1214
            %v1216 = vpop.f32.mrb[0].mxu0
            %v1217 = vadd.f32 %v1133, %v1216
            %1218 = vmatprep.mubr.f32.mxu0 0.0
            %1219 = vmatmul.mubr.f32.gmra.mrb[0].mxu0 %v294
            %v1220 = vpop.f32.mrb[0].mxu0
            %v1221 = vadd.f32 %v1129, %v1220
            %v1222 = vpop.f32.mrb[0].mxu0
            %v1223 = vadd.f32 %v1133, %v1222
            %1224 = vmatprep.mubr.f32.mxu0 0.0
            %1225 = vmatmul.mubr.f32.gmra.mrb[0].mxu0 %v295
            %v1226 = vpop.f32.mrb[0].mxu0
            %v1227 = vadd.f32 %v1129, %v1226
            %v1228 = vpop.f32.mrb[0].mxu0
            %v1229 = vadd.f32 %v1133, %v1228
            %1230 = vmatprep.mubr.f32.mxu0 0.0
            %1231 = vmatmul.mubr.f32.gmra.mrb[0].mxu0 %v296
            %v1232 = vpop.f32.mrb[0].mxu0
            %v1233 = vadd.f32 %v1129, %v1232
            %v1234 = vpop.f32.mrb[0].mxu0
            %v1235 = vadd.f32 %v1133, %v1234
            %1236 = vmatprep.mubr.f32.mxu0 0.0
            %1237 = vmatmul.mubr.f32.gmra.mrb[0].mxu0 %v297
            %v1238 = vpop.f32.mrb[0].mxu0
            %v1239 = vadd.f32 %v1129, %v1238
            %v1240 = vpop.f32.mrb[0].mxu0
            %v1241 = vadd.f32 %v1133, %v1240
            %1242 = vmatprep.mubr.f32.mxu0 0.0
            %1243 = vmatmul.mubr.f32.gmra.mrb[0].mxu0 %v298
            %v1244 = vpop.f32.mrb[0].mxu0
            %v1245 = vadd.f32 %v1129, %v1244
            %v1246 = vpop.f32.mrb[0].mxu0
            %v1247 = vadd.f32 %v1133, %v1246
            %1248 = vmatprep.mubr.f32.mxu0 0.0
            %1249 = vmatmul.mubr.f32.gmra.mrb[0].mxu0 %v299
            %v1250 = vpop.f32.mrb[0].mxu0
            %v1251 = vadd.f32 %v1129, %v1250
            %v1252 = vpop.f32.mrb[0].mxu0
            %v1253 = vadd.f32 %v1133, %v1252
            %1254 = vmatprep.mubr.f32.mxu0 0.0
            %1255 = vmatmul.mubr.f32.gmra.mrb[0].mxu0 %v300
            %v1256 = vpop.f32.mrb[0].mxu0
            %v1257 = vadd.f32 %v1129, %v1256
            %v1258 = vpop.f32.mrb[0].mxu0
            %v1259 = vadd.f32 %v1133, %v1258
            %1260 = vmatprep.mubr.f32.mxu0 0.0
            %1261 = vmatmul.mubr.f32.gmra.mrb[0].mxu0 %v301
            %v1262 = vpop.f32.mrb[0].mxu0
            %v1263 = vadd.f32 %v1129, %v1262
            %v1264 = vpop.f32.mrb[0].mxu0
            %v1265 = vadd.f32 %v1133, %v1264
            %1266 = vmatprep.mubr.f32.mxu0 0.0
            %1267 = vmatmul.mubr.f32.gmra.mrb[0].mxu0 %v302
            %v1268 = vpop.f32.mrb[0].mxu0
            %v1269 = vadd.f32 %v1129, %v1268
            %v1270 = vpop.f32.mrb[0].mxu0
            %v1271 = vadd.f32 %v1133, %v1270
            %1272 = vmatprep.mubr.f32.mxu0 0.0
            %1273 = vmatmul.mubr.f32.gmra.mrb[0].mxu0 %v303
            %v1274 = vpop.f32.mrb[0].mxu0
            %v1275 = vadd.f32 %v1129, %v1274
            %v1276 = vpop.f32.mrb[0].mxu0
            %v1277 = vadd.f32 %v1133, %v1276
            %1278 = vmatprep.mubr.f32.mxu0 0.0
            %1279 = vmatmul.mubr.f32.gmra.mrb[0].mxu0 %v304
            %v1280 = vpop.f32.mrb[0].mxu0
            %v1281 = vadd.f32 %v1129, %v1280
            %v1282 = vpop.f32.mrb[0].mxu0
            %v1283 = vadd.f32 %v1133, %v1282
            %1284 = vmatprep.mubr.f32.mxu0 0.0
            %1285 = vmatmul.mubr.f32.gmra.mrb[0].mxu0 %v305
            %v1286 = vpop.f32.mrb[0].mxu0
            %v1287 = vadd.f32 %v1129, %v1286
            %v1288 = vpop.f32.mrb[0].mxu0
            %v1289 = vadd.f32 %v1133, %v1288
            %1290 = vmatprep.mubr.f32.mxu0 0.0
            %1291 = vmatmul.mubr.f32.gmra.mrb[0].mxu0 %v306
            %v1292 = vpop.f32.mrb[0].mxu0
            %v1293 = vadd.f32 %v1129, %v1292
            %v1294 = vpop.f32.mrb[0].mxu0
            %v1295 = vadd.f32 %v1133, %v1294
            %1296 = vdwg.mxu0
            %vm1297 = vcmp.eq.s32.totalorder %v1039, 0
            %vm1298 = vcmp.eq.s32.totalorder %v1040, 0
            %vm1299 = vcmp.eq.s32.totalorder %v1041, 0
            %vm1300 = vcmp.eq.s32.totalorder %v1042, 0
            %vm1301 = vcmp.eq.s32.totalorder %v1043, 0
            %vm1302 = vcmp.eq.s32.totalorder %v1044, 0
            %vm1303 = vcmp.eq.s32.totalorder %v1045, 0
            %vm1304 = vcmp.eq.s32.totalorder %v1046, 0
            %vm1305 = vcmp.eq.s32.totalorder %v1047, 0
            %vm1306 = vcmp.eq.s32.totalorder %v1048, 0
            %vm1307 = vcmp.eq.s32.totalorder %v1049, 0
            %vm1308 = vcmp.eq.s32.totalorder %v1050, 0
            %vm1309 = vcmp.eq.s32.totalorder %v1051, 0
            %vm1310 = vcmp.eq.s32.totalorder %v1052, 0
            %vm1311 = vcmp.eq.s32.totalorder %v1053, 0
            %vm1312 = vcmp.eq.s32.totalorder %v1054, 0
            %v1313 = vld [vmem:[#allocation2] sm:$0xff]
            %v1314 = vld [vmem:[#allocation2 + $0x8] sm:$0xff]
            %v1315 = vld [vmem:[#allocation2 + $0x10] sm:$0xff]
            %v1316 = vld [vmem:[#allocation2 + $0x18] sm:$0xff]
            %v1317 = vld [vmem:[#allocation2 + $0x20] sm:$0xff]
            %v1318 = vld [vmem:[#allocation2 + $0x28] sm:$0xff]
            %v1319 = vld [vmem:[#allocation2 + $0x30] sm:$0xff]
            %v1320 = vld [vmem:[#allocation2 + $0x38] sm:$0xff]
            %v1321 = vld [vmem:[#allocation2 + $0x40] sm:$0xff]
            %v1322 = vld [vmem:[#allocation2 + $0x48] sm:$0xff]
            %v1323 = vld [vmem:[#allocation2 + $0x50] sm:$0xff]
            %v1324 = vld [vmem:[#allocation2 + $0x58] sm:$0xff]
            %v1325 = vld [vmem:[#allocation2 + $0x60] sm:$0xff]
            %v1326 = vld [vmem:[#allocation2 + $0x68] sm:$0xff]
            %v1327 = vld [vmem:[#allocation2 + $0x70] sm:$0xff]
            %v1328 = vld [vmem:[#allocation2 + $0x78] sm:$0xff]
            %v1329 = vld [vmem:[#allocation2 + $0x80] sm:$0xff]
            %v1330 = vld [vmem:[#allocation2 + $0x88] sm:$0xff]
            %v1331 = vld [vmem:[#allocation2 + $0x90] sm:$0xff]
            %v1332 = vld [vmem:[#allocation2 + $0x98] sm:$0xff]
            %v1333 = vld [vmem:[#allocation2 + $0xa0] sm:$0xff]
            %v1334 = vld [vmem:[#allocation2 + $0xa8] sm:$0xff]
            %v1335 = vld [vmem:[#allocation2 + $0xb0] sm:$0xff]
            %v1336 = vld [vmem:[#allocation2 + $0xb8] sm:$0xff]
            %v1337 = vld [vmem:[#allocation2 + $0xc0] sm:$0xff]
            %v1338 = vld [vmem:[#allocation2 + $0xc8] sm:$0xff]
            %v1339 = vld [vmem:[#allocation2 + $0xd0] sm:$0xff]
            %v1340 = vld [vmem:[#allocation2 + $0xd8] sm:$0xff]
            %v1341 = vld [vmem:[#allocation2 + $0xe0] sm:$0xff]
            %v1342 = vld [vmem:[#allocation2 + $0xe8] sm:$0xff]
            %v1343 = vld [vmem:[#allocation2 + $0xf0] sm:$0xff]
            %v1344 = vld [vmem:[#allocation2 + $0xf8] sm:$0xff]
            %v1345 = vsel %vm1297, 1, 0
            %v1346 = vsel %vm1298, 1, 0
            %v1347 = vsel %vm1299, 1, 0
            %v1348 = vsel %vm1300, 1, 0
            %v1349 = vsel %vm1301, 1, 0
            %v1350 = vsel %vm1302, 1, 0
            %v1351 = vsel %vm1303, 1, 0
            %v1352 = vsel %vm1304, 1, 0
            %v1353 = vsel %vm1305, 1, 0
            %v1354 = vsel %vm1306, 1, 0
            %v1355 = vsel %vm1307, 1, 0
            %v1356 = vsel %vm1308, 1, 0
            %v1357 = vsel %vm1309, 1, 0
            %v1358 = vsel %vm1310, 1, 0
            %v1359 = vsel %vm1311, 1, 0
            %v1360 = vsel %vm1312, 1, 0
            %1361 = vset.pattern.permute.xlu0 0
            %1362 = vperm.xlu0 %1361, %v1345
            %v1363 = vpop.permute.xlu0 %1362
            %1364 = vset.pattern.permute.xlu0 0
            %1365 = vperm.xlu0 %1364, %v1346
            %v1366 = vpop.permute.xlu0 %1365
            %1367 = vset.pattern.permute.xlu0 0
            %1368 = vperm.xlu0 %1367, %v1347
            %v1369 = vpop.permute.xlu0 %1368
            %1370 = vset.pattern.permute.xlu0 0
            %1371 = vperm.xlu0 %1370, %v1348
            %v1372 = vpop.permute.xlu0 %1371
            %1373 = vset.pattern.permute.xlu0 0
            %1374 = vperm.xlu0 %1373, %v1349
            %v1375 = vpop.permute.xlu0 %1374
            %1376 = vset.pattern.permute.xlu0 0
            %1377 = vperm.xlu0 %1376, %v1350
            %v1378 = vpop.permute.xlu0 %1377
            %1379 = vset.pattern.permute.xlu0 0
            %1380 = vperm.xlu0 %1379, %v1351
            %v1381 = vpop.permute.xlu0 %1380
            %1382 = vset.pattern.permute.xlu0 0
            %1383 = vperm.xlu0 %1382, %v1352
            %v1384 = vpop.permute.xlu0 %1383
            %1385 = vset.pattern.permute.xlu0 0
            %1386 = vperm.xlu0 %1385, %v1353
            %v1387 = vpop.permute.xlu0 %1386
            %1388 = vset.pattern.permute.xlu0 0
            %1389 = vperm.xlu0 %1388, %v1354
            %v1390 = vpop.permute.xlu0 %1389
            %1391 = vset.pattern.permute.xlu0 0
            %1392 = vperm.xlu0 %1391, %v1355
            %v1393 = vpop.permute.xlu0 %1392
            %1394 = vset.pattern.permute.xlu0 0
            %1395 = vperm.xlu0 %1394, %v1356
            %v1396 = vpop.permute.xlu0 %1395
            %1397 = vset.pattern.permute.xlu0 0
            %1398 = vperm.xlu0 %1397, %v1357
            %v1399 = vpop.permute.xlu0 %1398
            %1400 = vset.pattern.permute.xlu0 0
            %1401 = vperm.xlu0 %1400, %v1358
            %v1402 = vpop.permute.xlu0 %1401
            %1403 = vset.pattern.permute.xlu0 0
            %1404 = vperm.xlu0 %1403, %v1359
            %v1405 = vpop.permute.xlu0 %1404
            %1406 = vset.pattern.permute.xlu0 0
            %1407 = vperm.xlu0 %1406, %v1360
            %v1408 = vpop.permute.xlu0 %1407
            %vm1409 = vcmp.eq.s32.totalorder %v1363, 1
            %vm1410 = vcmp.eq.s32.totalorder %v1366, 1
            %vm1411 = vcmp.eq.s32.totalorder %v1369, 1
            %vm1412 = vcmp.eq.s32.totalorder %v1372, 1
            %vm1413 = vcmp.eq.s32.totalorder %v1375, 1
            %vm1414 = vcmp.eq.s32.totalorder %v1378, 1
            %vm1415 = vcmp.eq.s32.totalorder %v1381, 1
            %vm1416 = vcmp.eq.s32.totalorder %v1384, 1
            %vm1417 = vcmp.eq.s32.totalorder %v1387, 1
            %vm1418 = vcmp.eq.s32.totalorder %v1390, 1
            %vm1419 = vcmp.eq.s32.totalorder %v1393, 1
            %vm1420 = vcmp.eq.s32.totalorder %v1396, 1
            %vm1421 = vcmp.eq.s32.totalorder %v1399, 1
            %vm1422 = vcmp.eq.s32.totalorder %v1402, 1
            %vm1423 = vcmp.eq.s32.totalorder %v1405, 1
            %vm1424 = vcmp.eq.s32.totalorder %v1408, 1
            %v1425 = vsel %vm1409, %v1203, %v1313
            %v1426 = vsel %vm1409, %v1205, %v1314
            %v1427 = vsel %vm1410, %v1209, %v1315
            %v1428 = vsel %vm1410, %v1211, %v1316
            %v1429 = vsel %vm1411, %v1215, %v1317
            %v1430 = vsel %vm1411, %v1217, %v1318
            %v1431 = vsel %vm1412, %v1221, %v1319
            %v1432 = vsel %vm1412, %v1223, %v1320
            %v1433 = vsel %vm1413, %v1227, %v1321
            %v1434 = vsel %vm1413, %v1229, %v1322
            %v1435 = vsel %vm1414, %v1233, %v1323
            %v1436 = vsel %vm1414, %v1235, %v1324
            %v1437 = vsel %vm1415, %v1239, %v1325
            %v1438 = vsel %vm1415, %v1241, %v1326
            %v1439 = vsel %vm1416, %v1245, %v1327
            %v1440 = vsel %vm1416, %v1247, %v1328
            %v1441 = vsel %vm1417, %v1251, %v1329
            %v1442 = vsel %vm1417, %v1253, %v1330
            %v1443 = vsel %vm1418, %v1257, %v1331
            %v1444 = vsel %vm1418, %v1259, %v1332
            %v1445 = vsel %vm1419, %v1263, %v1333
            %v1446 = vsel %vm1419, %v1265, %v1334
            %v1447 = vsel %vm1420, %v1269, %v1335
            %v1448 = vsel %vm1420, %v1271, %v1336
            %v1449 = vsel %vm1421, %v1275, %v1337
            %v1450 = vsel %vm1421, %v1277, %v1338
            %v1451 = vsel %vm1422, %v1281, %v1339
            %v1452 = vsel %vm1422, %v1283, %v1340
            %v1453 = vsel %vm1423, %v1287, %v1341
            %v1454 = vsel %vm1423, %v1289, %v1342
            %v1455 = vsel %vm1424, %v1293, %v1343
            %v1456 = vsel %vm1424, %v1295, %v1344
            %1457 = vst [vmem:[#allocation2] sm:$0xff] %v1425
            %1458 = vst [vmem:[#allocation2 + $0x8] sm:$0xff] %v1426
            %1459 = vst [vmem:[#allocation2 + $0x10] sm:$0xff] %v1427
            %1460 = vst [vmem:[#allocation2 + $0x18] sm:$0xff] %v1428
            %1461 = vst [vmem:[#allocation2 + $0x20] sm:$0xff] %v1429
            %1462 = vst [vmem:[#allocation2 + $0x28] sm:$0xff] %v1430
            %1463 = vst [vmem:[#allocation2 + $0x30] sm:$0xff] %v1431
            %1464 = vst [vmem:[#allocation2 + $0x38] sm:$0xff] %v1432
            %1465 = vst [vmem:[#allocation2 + $0x40] sm:$0xff] %v1433
            %1466 = vst [vmem:[#allocation2 + $0x48] sm:$0xff] %v1434
            %1467 = vst [vmem:[#allocation2 + $0x50] sm:$0xff] %v1435
            %1468 = vst [vmem:[#allocation2 + $0x58] sm:$0xff] %v1436
            %1469 = vst [vmem:[#allocation2 + $0x60] sm:$0xff] %v1437
            %1470 = vst [vmem:[#allocation2 + $0x68] sm:$0xff] %v1438
            %1471 = vst [vmem:[#allocation2 + $0x70] sm:$0xff] %v1439
            %1472 = vst [vmem:[#allocation2 + $0x78] sm:$0xff] %v1440
            %1473 = vst [vmem:[#allocation2 + $0x80] sm:$0xff] %v1441
            %1474 = vst [vmem:[#allocation2 + $0x88] sm:$0xff] %v1442
            %1475 = vst [vmem:[#allocation2 + $0x90] sm:$0xff] %v1443
            %1476 = vst [vmem:[#allocation2 + $0x98] sm:$0xff] %v1444
            %1477 = vst [vmem:[#allocation2 + $0xa0] sm:$0xff] %v1445
            %1478 = vst [vmem:[#allocation2 + $0xa8] sm:$0xff] %v1446
            %1479 = vst [vmem:[#allocation2 + $0xb0] sm:$0xff] %v1447
            %1480 = vst [vmem:[#allocation2 + $0xb8] sm:$0xff] %v1448
            %1481 = vst [vmem:[#allocation2 + $0xc0] sm:$0xff] %v1449
            %1482 = vst [vmem:[#allocation2 + $0xc8] sm:$0xff] %v1450
            %1483 = vst [vmem:[#allocation2 + $0xd0] sm:$0xff] %v1451
            %1484 = vst [vmem:[#allocation2 + $0xd8] sm:$0xff] %v1452
            %1485 = vst [vmem:[#allocation2 + $0xe0] sm:$0xff] %v1453
            %1486 = vst [vmem:[#allocation2 + $0xe8] sm:$0xff] %v1454
            %1487 = vst [vmem:[#allocation2 + $0xf0] sm:$0xff] %v1455
            %1488 = vst [vmem:[#allocation2 + $0xf8] sm:$0xff] %v1456
          $region60: #{tpu_custom_call.1} parent=55 // pred_fallthru
            _
          %s1489 = sshra.s32 %s36, 7
          %s1490 = sand.u32 %s36, 127
          %s1491 = sadd.s32 %s1489, 1
          %s1492 = smul.u32 %s1491, 128
          %s1493 = sshra.s32 %s36, 7
          %s1494 = sand.u32 %s36, 127
          %s1495 = sadd.s32 %s1492, %s1494
          %s1496 = sld [smem:[#allocation4 + %s1495]]
          %p1497 = scmp.ne.s32.totalorder %s1496, 0
          // Predicated region
          $region61: #{tpu_custom_call.1} parent=55 // pred_check
            %p1498 = pneg %p1497
          $region62: #{tpu_custom_call.1} parent=55 // pred_check_branch
            %1500 = sbr.rel (%p1498) target = $region64
          $region63: #{tpu_custom_call.1} parent=55 // pred_region
            %s1501 = scalar_lea.vmem [#allocation6], 256
            %v1502 = vld [vmem:[%s1501] sm:$0xff]
            %v1503 = vld [vmem:[%s1501 + $0x8] sm:$0xff]
            %v1504 = vld [vmem:[%s1501 + $0x10] sm:$0xff]
            %v1505 = vld [vmem:[%s1501 + $0x18] sm:$0xff]
            %v1506 = vld [vmem:[%s1501 + $0x20] sm:$0xff]
            %v1507 = vld [vmem:[%s1501 + $0x28] sm:$0xff]
            %v1508 = vld [vmem:[%s1501 + $0x30] sm:$0xff]
            %v1509 = vld [vmem:[%s1501 + $0x38] sm:$0xff]
            %v1510 = vld [vmem:[%s1501 + $0x40] sm:$0xff]
            %v1511 = vld [vmem:[%s1501 + $0x48] sm:$0xff]
            %v1512 = vld [vmem:[%s1501 + $0x50] sm:$0xff]
            %v1513 = vld [vmem:[%s1501 + $0x58] sm:$0xff]
            %v1514 = vld [vmem:[%s1501 + $0x60] sm:$0xff]
            %v1515 = vld [vmem:[%s1501 + $0x68] sm:$0xff]
            %v1516 = vld [vmem:[%s1501 + $0x70] sm:$0xff]
            %v1517 = vld [vmem:[%s1501 + $0x78] sm:$0xff]
            %v1518 = vld [vmem:[%s1501 + $0x80] sm:$0xff]
            %v1519 = vld [vmem:[%s1501 + $0x88] sm:$0xff]
            %v1520 = vld [vmem:[%s1501 + $0x90] sm:$0xff]
            %v1521 = vld [vmem:[%s1501 + $0x98] sm:$0xff]
            %v1522 = vld [vmem:[%s1501 + $0xa0] sm:$0xff]
            %v1523 = vld [vmem:[%s1501 + $0xa8] sm:$0xff]
            %v1524 = vld [vmem:[%s1501 + $0xb0] sm:$0xff]
            %v1525 = vld [vmem:[%s1501 + $0xb8] sm:$0xff]
            %v1526 = vld [vmem:[%s1501 + $0xc0] sm:$0xff]
            %v1527 = vld [vmem:[%s1501 + $0xc8] sm:$0xff]
            %v1528 = vld [vmem:[%s1501 + $0xd0] sm:$0xff]
            %v1529 = vld [vmem:[%s1501 + $0xd8] sm:$0xff]
            %v1530 = vld [vmem:[%s1501 + $0xe0] sm:$0xff]
            %v1531 = vld [vmem:[%s1501 + $0xe8] sm:$0xff]
            %v1532 = vld [vmem:[%s1501 + $0xf0] sm:$0xff]
            %v1533 = vld [vmem:[%s1501 + $0xf8] sm:$0xff]
            %s1534 = scalar_lea.vmem %s287, 2
            %v1535 = vld [vmem:[%s1534] sm:$0x3]
            %v1537 = vlaneseq
            %v1538 = vshrl.u32 %v1537, 7
            %v1539 = vsub.s32 0, %v1538
            %v1540 = vrot.slane %v1535, %v1539
            %v1541 = vlaneseq
            %v1542 = vshrl.u32 %v1541, 7
            %v1543 = vsub.s32 1, %v1542
            %v1544 = vrot.slane %v1535, %v1543
            %1547 = vmatprep.subr.mxu0 %v1503
            %1548 = vmatpush1.msra.mxu0 %v1502
            %1549 = vmatprep.subr.mxu0 %v1505
            %1550 = vmatpush1.msra.mxu0 %v1504
            %1551 = vmatprep.subr.mxu0 %v1507
            %1552 = vmatpush1.msra.mxu0 %v1506
            %1553 = vmatprep.subr.mxu0 %v1509
            %1554 = vmatpush1.msra.mxu0 %v1508
            %1555 = vmatprep.subr.mxu0 %v1511
            %1556 = vmatpush1.msra.mxu0 %v1510
            %1557 = vmatprep.subr.mxu0 %v1513
            %1558 = vmatpush1.msra.mxu0 %v1512
            %1559 = vmatprep.subr.mxu0 %v1515
            %1560 = vmatpush1.msra.mxu0 %v1514
            %1561 = vmatprep.subr.mxu0 %v1517
            %1562 = vmatpush1.msra.mxu0 %v1516
            %1563 = vmatprep.subr.mxu0 %v1519
            %1564 = vmatpush1.msra.mxu0 %v1518
            %1565 = vmatprep.subr.mxu0 %v1521
            %1566 = vmatpush1.msra.mxu0 %v1520
            %1567 = vmatprep.subr.mxu0 %v1523
            %1568 = vmatpush1.msra.mxu0 %v1522
            %1569 = vmatprep.subr.mxu0 %v1525
            %1570 = vmatpush1.msra.mxu0 %v1524
            %1571 = vmatprep.subr.mxu0 %v1527
            %1572 = vmatpush1.msra.mxu0 %v1526
            %1573 = vmatprep.subr.mxu0 %v1529
            %1574 = vmatpush1.msra.mxu0 %v1528
            %1575 = vmatprep.subr.mxu0 %v1531
            %1576 = vmatpush1.msra.mxu0 %v1530
            %1577 = vmatprep.subr.mxu0 %v1533
            %1578 = vmatpush1.msra.mxu0 %v1532
            %1579 = vmatprep.subr.mxu0 0.0
            %1580 = vmatpush1.msra.mxu0 0.0
            %1581 = vmatprep.subr.mxu0 0.0
            %1582 = vmatpush1.msra.mxu0 0.0
            %1583 = vmatprep.subr.mxu0 0.0
            %1584 = vmatpush1.msra.mxu0 0.0
            %1585 = vmatprep.subr.mxu0 0.0
            %1586 = vmatpush1.msra.mxu0 0.0
            %1587 = vmatprep.subr.mxu0 0.0
            %1588 = vmatpush1.msra.mxu0 0.0
            %1589 = vmatprep.subr.mxu0 0.0
            %1590 = vmatpush1.msra.mxu0 0.0
            %1591 = vmatprep.subr.mxu0 0.0
            %1592 = vmatpush1.msra.mxu0 0.0
            %1593 = vmatprep.subr.mxu0 0.0
            %1594 = vmatpush1.msra.mxu0 0.0
            %1595 = vmatprep.subr.mxu0 0.0
            %1596 = vmatpush1.msra.mxu0 0.0
            %1597 = vmatprep.subr.mxu0 0.0
            %1598 = vmatpush1.msra.mxu0 0.0
            %1599 = vmatprep.subr.mxu0 0.0
            %1600 = vmatpush1.msra.mxu0 0.0
            %1601 = vmatprep.subr.mxu0 0.0
            %1602 = vmatpush1.msra.mxu0 0.0
            %1603 = vmatprep.subr.mxu0 0.0
            %1604 = vmatpush1.msra.mxu0 0.0
            %1605 = vmatprep.subr.mxu0 0.0
            %1606 = vmatpush1.msra.mxu0 0.0
            %1607 = vmatprep.subr.mxu0 0.0
            %1608 = vmatpush1.msra.mxu0 0.0
            %1609 = vmatprep.subr.mxu0 0.0
            %1610 = vmatpush1.msra.mxu0 0.0
            %1611 = vmatprep.mubr.f32.mxu0 0.0
            %1612 = vmatmul.mubr.f32.gmra.mrb[0].mxu0 %v291
            %v1613 = vpop.f32.mrb[0].mxu0
            %v1614 = vadd.f32 %v1540, %v1613
            %v1615 = vpop.f32.mrb[0].mxu0
            %v1616 = vadd.f32 %v1544, %v1615
            %1617 = vmatprep.mubr.f32.mxu0 0.0
            %1618 = vmatmul.mubr.f32.gmra.mrb[0].mxu0 %v292
            %v1619 = vpop.f32.mrb[0].mxu0
            %v1620 = vadd.f32 %v1540, %v1619
            %v1621 = vpop.f32.mrb[0].mxu0
            %v1622 = vadd.f32 %v1544, %v1621
            %1623 = vmatprep.mubr.f32.mxu0 0.0
            %1624 = vmatmul.mubr.f32.gmra.mrb[0].mxu0 %v293
            %v1625 = vpop.f32.mrb[0].mxu0
            %v1626 = vadd.f32 %v1540, %v1625
            %v1627 = vpop.f32.mrb[0].mxu0
            %v1628 = vadd.f32 %v1544, %v1627
            %1629 = vmatprep.mubr.f32.mxu0 0.0
            %1630 = vmatmul.mubr.f32.gmra.mrb[0].mxu0 %v294
            %v1631 = vpop.f32.mrb[0].mxu0
            %v1632 = vadd.f32 %v1540, %v1631
            %v1633 = vpop.f32.mrb[0].mxu0
            %v1634 = vadd.f32 %v1544, %v1633
            %1635 = vmatprep.mubr.f32.mxu0 0.0
            %1636 = vmatmul.mubr.f32.gmra.mrb[0].mxu0 %v295
            %v1637 = vpop.f32.mrb[0].mxu0
            %v1638 = vadd.f32 %v1540, %v1637
            %v1639 = vpop.f32.mrb[0].mxu0
            %v1640 = vadd.f32 %v1544, %v1639
            %1641 = vmatprep.mubr.f32.mxu0 0.0
            %1642 = vmatmul.mubr.f32.gmra.mrb[0].mxu0 %v296
            %v1643 = vpop.f32.mrb[0].mxu0
            %v1644 = vadd.f32 %v1540, %v1643
            %v1645 = vpop.f32.mrb[0].mxu0
            %v1646 = vadd.f32 %v1544, %v1645
            %1647 = vmatprep.mubr.f32.mxu0 0.0
            %1648 = vmatmul.mubr.f32.gmra.mrb[0].mxu0 %v297
            %v1649 = vpop.f32.mrb[0].mxu0
            %v1650 = vadd.f32 %v1540, %v1649
            %v1651 = vpop.f32.mrb[0].mxu0
            %v1652 = vadd.f32 %v1544, %v1651
            %1653 = vmatprep.mubr.f32.mxu0 0.0
            %1654 = vmatmul.mubr.f32.gmra.mrb[0].mxu0 %v298
            %v1655 = vpop.f32.mrb[0].mxu0
            %v1656 = vadd.f32 %v1540, %v1655
            %v1657 = vpop.f32.mrb[0].mxu0
            %v1658 = vadd.f32 %v1544, %v1657
            %1659 = vmatprep.mubr.f32.mxu0 0.0
            %1660 = vmatmul.mubr.f32.gmra.mrb[0].mxu0 %v299
            %v1661 = vpop.f32.mrb[0].mxu0
            %v1662 = vadd.f32 %v1540, %v1661
            %v1663 = vpop.f32.mrb[0].mxu0
            %v1664 = vadd.f32 %v1544, %v1663
            %1665 = vmatprep.mubr.f32.mxu0 0.0
            %1666 = vmatmul.mubr.f32.gmra.mrb[0].mxu0 %v300
            %v1667 = vpop.f32.mrb[0].mxu0
            %v1668 = vadd.f32 %v1540, %v1667
            %v1669 = vpop.f32.mrb[0].mxu0
            %v1670 = vadd.f32 %v1544, %v1669
            %1671 = vmatprep.mubr.f32.mxu0 0.0
            %1672 = vmatmul.mubr.f32.gmra.mrb[0].mxu0 %v301
            %v1673 = vpop.f32.mrb[0].mxu0
            %v1674 = vadd.f32 %v1540, %v1673
            %v1675 = vpop.f32.mrb[0].mxu0
            %v1676 = vadd.f32 %v1544, %v1675
            %1677 = vmatprep.mubr.f32.mxu0 0.0
            %1678 = vmatmul.mubr.f32.gmra.mrb[0].mxu0 %v302
            %v1679 = vpop.f32.mrb[0].mxu0
            %v1680 = vadd.f32 %v1540, %v1679
            %v1681 = vpop.f32.mrb[0].mxu0
            %v1682 = vadd.f32 %v1544, %v1681
            %1683 = vmatprep.mubr.f32.mxu0 0.0
            %1684 = vmatmul.mubr.f32.gmra.mrb[0].mxu0 %v303
            %v1685 = vpop.f32.mrb[0].mxu0
            %v1686 = vadd.f32 %v1540, %v1685
            %v1687 = vpop.f32.mrb[0].mxu0
            %v1688 = vadd.f32 %v1544, %v1687
            %1689 = vmatprep.mubr.f32.mxu0 0.0
            %1690 = vmatmul.mubr.f32.gmra.mrb[0].mxu0 %v304
            %v1691 = vpop.f32.mrb[0].mxu0
            %v1692 = vadd.f32 %v1540, %v1691
            %v1693 = vpop.f32.mrb[0].mxu0
            %v1694 = vadd.f32 %v1544, %v1693
            %1695 = vmatprep.mubr.f32.mxu0 0.0
            %1696 = vmatmul.mubr.f32.gmra.mrb[0].mxu0 %v305
            %v1697 = vpop.f32.mrb[0].mxu0
            %v1698 = vadd.f32 %v1540, %v1697
            %v1699 = vpop.f32.mrb[0].mxu0
            %v1700 = vadd.f32 %v1544, %v1699
            %1701 = vmatprep.mubr.f32.mxu0 0.0
            %1702 = vmatmul.mubr.f32.gmra.mrb[0].mxu0 %v306
            %v1703 = vpop.f32.mrb[0].mxu0
            %v1704 = vadd.f32 %v1540, %v1703
            %v1705 = vpop.f32.mrb[0].mxu0
            %v1706 = vadd.f32 %v1544, %v1705
            %1707 = vdwg.mxu0
            %vm1708 = vcmp.eq.s32.totalorder %v1039, 1
            %vm1709 = vcmp.eq.s32.totalorder %v1040, 1
            %vm1710 = vcmp.eq.s32.totalorder %v1041, 1
            %vm1711 = vcmp.eq.s32.totalorder %v1042, 1
            %vm1712 = vcmp.eq.s32.totalorder %v1043, 1
            %vm1713 = vcmp.eq.s32.totalorder %v1044, 1
            %vm1714 = vcmp.eq.s32.totalorder %v1045, 1
            %vm1715 = vcmp.eq.s32.totalorder %v1046, 1
            %vm1716 = vcmp.eq.s32.totalorder %v1047, 1
            %vm1717 = vcmp.eq.s32.totalorder %v1048, 1
            %vm1718 = vcmp.eq.s32.totalorder %v1049, 1
            %vm1719 = vcmp.eq.s32.totalorder %v1050, 1
            %vm1720 = vcmp.eq.s32.totalorder %v1051, 1
            %vm1721 = vcmp.eq.s32.totalorder %v1052, 1
            %vm1722 = vcmp.eq.s32.totalorder %v1053, 1
            %vm1723 = vcmp.eq.s32.totalorder %v1054, 1
            %v1724 = vld [vmem:[#allocation2] sm:$0xff]
            %v1725 = vld [vmem:[#allocation2 + $0x8] sm:$0xff]
            %v1726 = vld [vmem:[#allocation2 + $0x10] sm:$0xff]
            %v1727 = vld [vmem:[#allocation2 + $0x18] sm:$0xff]
            %v1728 = vld [vmem:[#allocation2 + $0x20] sm:$0xff]
            %v1729 = vld [vmem:[#allocation2 + $0x28] sm:$0xff]
            %v1730 = vld [vmem:[#allocation2 + $0x30] sm:$0xff]
            %v1731 = vld [vmem:[#allocation2 + $0x38] sm:$0xff]
            %v1732 = vld [vmem:[#allocation2 + $0x40] sm:$0xff]
            %v1733 = vld [vmem:[#allocation2 + $0x48] sm:$0xff]
            %v1734 = vld [vmem:[#allocation2 + $0x50] sm:$0xff]
            %v1735 = vld [vmem:[#allocation2 + $0x58] sm:$0xff]
            %v1736 = vld [vmem:[#allocation2 + $0x60] sm:$0xff]
            %v1737 = vld [vmem:[#allocation2 + $0x68] sm:$0xff]
            %v1738 = vld [vmem:[#allocation2 + $0x70] sm:$0xff]
            %v1739 = vld [vmem:[#allocation2 + $0x78] sm:$0xff]
            %v1740 = vld [vmem:[#allocation2 + $0x80] sm:$0xff]
            %v1741 = vld [vmem:[#allocation2 + $0x88] sm:$0xff]
            %v1742 = vld [vmem:[#allocation2 + $0x90] sm:$0xff]
            %v1743 = vld [vmem:[#allocation2 + $0x98] sm:$0xff]
            %v1744 = vld [vmem:[#allocation2 + $0xa0] sm:$0xff]
            %v1745 = vld [vmem:[#allocation2 + $0xa8] sm:$0xff]
            %v1746 = vld [vmem:[#allocation2 + $0xb0] sm:$0xff]
            %v1747 = vld [vmem:[#allocation2 + $0xb8] sm:$0xff]
            %v1748 = vld [vmem:[#allocation2 + $0xc0] sm:$0xff]
            %v1749 = vld [vmem:[#allocation2 + $0xc8] sm:$0xff]
            %v1750 = vld [vmem:[#allocation2 + $0xd0] sm:$0xff]
            %v1751 = vld [vmem:[#allocation2 + $0xd8] sm:$0xff]
            %v1752 = vld [vmem:[#allocation2 + $0xe0] sm:$0xff]
            %v1753 = vld [vmem:[#allocation2 + $0xe8] sm:$0xff]
            %v1754 = vld [vmem:[#allocation2 + $0xf0] sm:$0xff]
            %v1755 = vld [vmem:[#allocation2 + $0xf8] sm:$0xff]
            %v1756 = vsel %vm1708, 1, 0
            %v1757 = vsel %vm1709, 1, 0
            %v1758 = vsel %vm1710, 1, 0
            %v1759 = vsel %vm1711, 1, 0
            %v1760 = vsel %vm1712, 1, 0
            %v1761 = vsel %vm1713, 1, 0
            %v1762 = vsel %vm1714, 1, 0
            %v1763 = vsel %vm1715, 1, 0
            %v1764 = vsel %vm1716, 1, 0
            %v1765 = vsel %vm1717, 1, 0
            %v1766 = vsel %vm1718, 1, 0
            %v1767 = vsel %vm1719, 1, 0
            %v1768 = vsel %vm1720, 1, 0
            %v1769 = vsel %vm1721, 1, 0
            %v1770 = vsel %vm1722, 1, 0
            %v1771 = vsel %vm1723, 1, 0
            %1772 = vset.pattern.permute.xlu0 0
            %1773 = vperm.xlu0 %1772, %v1756
            %v1774 = vpop.permute.xlu0 %1773
            %1775 = vset.pattern.permute.xlu0 0
            %1776 = vperm.xlu0 %1775, %v1757
            %v1777 = vpop.permute.xlu0 %1776
            %1778 = vset.pattern.permute.xlu0 0
            %1779 = vperm.xlu0 %1778, %v1758
            %v1780 = vpop.permute.xlu0 %1779
            %1781 = vset.pattern.permute.xlu0 0
            %1782 = vperm.xlu0 %1781, %v1759
            %v1783 = vpop.permute.xlu0 %1782
            %1784 = vset.pattern.permute.xlu0 0
            %1785 = vperm.xlu0 %1784, %v1760
            %v1786 = vpop.permute.xlu0 %1785
            %1787 = vset.pattern.permute.xlu0 0
            %1788 = vperm.xlu0 %1787, %v1761
            %v1789 = vpop.permute.xlu0 %1788
            %1790 = vset.pattern.permute.xlu0 0
            %1791 = vperm.xlu0 %1790, %v1762
            %v1792 = vpop.permute.xlu0 %1791
            %1793 = vset.pattern.permute.xlu0 0
            %1794 = vperm.xlu0 %1793, %v1763
            %v1795 = vpop.permute.xlu0 %1794
            %1796 = vset.pattern.permute.xlu0 0
            %1797 = vperm.xlu0 %1796, %v1764
            %v1798 = vpop.permute.xlu0 %1797
            %1799 = vset.pattern.permute.xlu0 0
            %1800 = vperm.xlu0 %1799, %v1765
            %v1801 = vpop.permute.xlu0 %1800
            %1802 = vset.pattern.permute.xlu0 0
            %1803 = vperm.xlu0 %1802, %v1766
            %v1804 = vpop.permute.xlu0 %1803
            %1805 = vset.pattern.permute.xlu0 0
            %1806 = vperm.xlu0 %1805, %v1767
            %v1807 = vpop.permute.xlu0 %1806
            %1808 = vset.pattern.permute.xlu0 0
            %1809 = vperm.xlu0 %1808, %v1768
            %v1810 = vpop.permute.xlu0 %1809
            %1811 = vset.pattern.permute.xlu0 0
            %1812 = vperm.xlu0 %1811, %v1769
            %v1813 = vpop.permute.xlu0 %1812
            %1814 = vset.pattern.permute.xlu0 0
            %1815 = vperm.xlu0 %1814, %v1770
            %v1816 = vpop.permute.xlu0 %1815
            %1817 = vset.pattern.permute.xlu0 0
            %1818 = vperm.xlu0 %1817, %v1771
            %v1819 = vpop.permute.xlu0 %1818
            %vm1820 = vcmp.eq.s32.totalorder %v1774, 1
            %vm1821 = vcmp.eq.s32.totalorder %v1777, 1
            %vm1822 = vcmp.eq.s32.totalorder %v1780, 1
            %vm1823 = vcmp.eq.s32.totalorder %v1783, 1
            %vm1824 = vcmp.eq.s32.totalorder %v1786, 1
            %vm1825 = vcmp.eq.s32.totalorder %v1789, 1
            %vm1826 = vcmp.eq.s32.totalorder %v1792, 1
            %vm1827 = vcmp.eq.s32.totalorder %v1795, 1
            %vm1828 = vcmp.eq.s32.totalorder %v1798, 1
            %vm1829 = vcmp.eq.s32.totalorder %v1801, 1
            %vm1830 = vcmp.eq.s32.totalorder %v1804, 1
            %vm1831 = vcmp.eq.s32.totalorder %v1807, 1
            %vm1832 = vcmp.eq.s32.totalorder %v1810, 1
            %vm1833 = vcmp.eq.s32.totalorder %v1813, 1
            %vm1834 = vcmp.eq.s32.totalorder %v1816, 1
            %vm1835 = vcmp.eq.s32.totalorder %v1819, 1
            %v1836 = vsel %vm1820, %v1614, %v1724
            %v1837 = vsel %vm1820, %v1616, %v1725
            %v1838 = vsel %vm1821, %v1620, %v1726
            %v1839 = vsel %vm1821, %v1622, %v1727
            %v1840 = vsel %vm1822, %v1626, %v1728
            %v1841 = vsel %vm1822, %v1628, %v1729
            %v1842 = vsel %vm1823, %v1632, %v1730
            %v1843 = vsel %vm1823, %v1634, %v1731
            %v1844 = vsel %vm1824, %v1638, %v1732
            %v1845 = vsel %vm1824, %v1640, %v1733
            %v1846 = vsel %vm1825, %v1644, %v1734
            %v1847 = vsel %vm1825, %v1646, %v1735
            %v1848 = vsel %vm1826, %v1650, %v1736
            %v1849 = vsel %vm1826, %v1652, %v1737
            %v1850 = vsel %vm1827, %v1656, %v1738
            %v1851 = vsel %vm1827, %v1658, %v1739
            %v1852 = vsel %vm1828, %v1662, %v1740
            %v1853 = vsel %vm1828, %v1664, %v1741
            %v1854 = vsel %vm1829, %v1668, %v1742
            %v1855 = vsel %vm1829, %v1670, %v1743
            %v1856 = vsel %vm1830, %v1674, %v1744
            %v1857 = vsel %vm1830, %v1676, %v1745
            %v1858 = vsel %vm1831, %v1680, %v1746
            %v1859 = vsel %vm1831, %v1682, %v1747
            %v1860 = vsel %vm1832, %v1686, %v1748
            %v1861 = vsel %vm1832, %v1688, %v1749
            %v1862 = vsel %vm1833, %v1692, %v1750
            %v1863 = vsel %vm1833, %v1694, %v1751
            %v1864 = vsel %vm1834, %v1698, %v1752
            %v1865 = vsel %vm1834, %v1700, %v1753
            %v1866 = vsel %vm1835, %v1704, %v1754
            %v1867 = vsel %vm1835, %v1706, %v1755
            %1868 = vst [vmem:[#allocation2] sm:$0xff] %v1836
            %1869 = vst [vmem:[#allocation2 + $0x8] sm:$0xff] %v1837
            %1870 = vst [vmem:[#allocation2 + $0x10] sm:$0xff] %v1838
            %1871 = vst [vmem:[#allocation2 + $0x18] sm:$0xff] %v1839
            %1872 = vst [vmem:[#allocation2 + $0x20] sm:$0xff] %v1840
            %1873 = vst [vmem:[#allocation2 + $0x28] sm:$0xff] %v1841
            %1874 = vst [vmem:[#allocation2 + $0x30] sm:$0xff] %v1842
            %1875 = vst [vmem:[#allocation2 + $0x38] sm:$0xff] %v1843
            %1876 = vst [vmem:[#allocation2 + $0x40] sm:$0xff] %v1844
            %1877 = vst [vmem:[#allocation2 + $0x48] sm:$0xff] %v1845
            %1878 = vst [vmem:[#allocation2 + $0x50] sm:$0xff] %v1846
            %1879 = vst [vmem:[#allocation2 + $0x58] sm:$0xff] %v1847
            %1880 = vst [vmem:[#allocation2 + $0x60] sm:$0xff] %v1848
            %1881 = vst [vmem:[#allocation2 + $0x68] sm:$0xff] %v1849
            %1882 = vst [vmem:[#allocation2 + $0x70] sm:$0xff] %v1850
            %1883 = vst [vmem:[#allocation2 + $0x78] sm:$0xff] %v1851
            %1884 = vst [vmem:[#allocation2 + $0x80] sm:$0xff] %v1852
            %1885 = vst [vmem:[#allocation2 + $0x88] sm:$0xff] %v1853
            %1886 = vst [vmem:[#allocation2 + $0x90] sm:$0xff] %v1854
            %1887 = vst [vmem:[#allocation2 + $0x98] sm:$0xff] %v1855
            %1888 = vst [vmem:[#allocation2 + $0xa0] sm:$0xff] %v1856
            %1889 = vst [vmem:[#allocation2 + $0xa8] sm:$0xff] %v1857
            %1890 = vst [vmem:[#allocation2 + $0xb0] sm:$0xff] %v1858
            %1891 = vst [vmem:[#allocation2 + $0xb8] sm:$0xff] %v1859
            %1892 = vst [vmem:[#allocation2 + $0xc0] sm:$0xff] %v1860
            %1893 = vst [vmem:[#allocation2 + $0xc8] sm:$0xff] %v1861
            %1894 = vst [vmem:[#allocation2 + $0xd0] sm:$0xff] %v1862
            %1895 = vst [vmem:[#allocation2 + $0xd8] sm:$0xff] %v1863
            %1896 = vst [vmem:[#allocation2 + $0xe0] sm:$0xff] %v1864
            %1897 = vst [vmem:[#allocation2 + $0xe8] sm:$0xff] %v1865
            %1898 = vst [vmem:[#allocation2 + $0xf0] sm:$0xff] %v1866
            %1899 = vst [vmem:[#allocation2 + $0xf8] sm:$0xff] %v1867
          $region64: #{tpu_custom_call.1} parent=55 // pred_fallthru
            _
          %s1900 = sadd.s32 %s1489, 2
          %s1901 = smul.u32 %s1900, 128
          %s1902 = sadd.s32 %s1901, %s1494
          %s1903 = sld [smem:[#allocation4 + %s1902]]
          %p1904 = scmp.ne.s32.totalorder %s1903, 0
          // Predicated region
          $region65: #{tpu_custom_call.1} parent=55 // pred_check
            %p1905 = pneg %p1904
          $region66: #{tpu_custom_call.1} parent=55 // pred_check_branch
            %1907 = sbr.rel (%p1905) target = $region68
          $region67: #{tpu_custom_call.1} parent=55 // pred_region
            %s1908 = scalar_lea.vmem [#allocation6], 512
            %v1909 = vld [vmem:[%s1908] sm:$0xff]
            %v1910 = vld [vmem:[%s1908 + $0x8] sm:$0xff]
            %v1911 = vld [vmem:[%s1908 + $0x10] sm:$0xff]
            %v1912 = vld [vmem:[%s1908 + $0x18] sm:$0xff]
            %v1913 = vld [vmem:[%s1908 + $0x20] sm:$0xff]
            %v1914 = vld [vmem:[%s1908 + $0x28] sm:$0xff]
            %v1915 = vld [vmem:[%s1908 + $0x30] sm:$0xff]
            %v1916 = vld [vmem:[%s1908 + $0x38] sm:$0xff]
            %v1917 = vld [vmem:[%s1908 + $0x40] sm:$0xff]
            %v1918 = vld [vmem:[%s1908 + $0x48] sm:$0xff]
            %v1919 = vld [vmem:[%s1908 + $0x50] sm:$0xff]
            %v1920 = vld [vmem:[%s1908 + $0x58] sm:$0xff]
            %v1921 = vld [vmem:[%s1908 + $0x60] sm:$0xff]
            %v1922 = vld [vmem:[%s1908 + $0x68] sm:$0xff]
            %v1923 = vld [vmem:[%s1908 + $0x70] sm:$0xff]
            %v1924 = vld [vmem:[%s1908 + $0x78] sm:$0xff]
            %v1925 = vld [vmem:[%s1908 + $0x80] sm:$0xff]
            %v1926 = vld [vmem:[%s1908 + $0x88] sm:$0xff]
            %v1927 = vld [vmem:[%s1908 + $0x90] sm:$0xff]
            %v1928 = vld [vmem:[%s1908 + $0x98] sm:$0xff]
            %v1929 = vld [vmem:[%s1908 + $0xa0] sm:$0xff]
            %v1930 = vld [vmem:[%s1908 + $0xa8] sm:$0xff]
            %v1931 = vld [vmem:[%s1908 + $0xb0] sm:$0xff]
            %v1932 = vld [vmem:[%s1908 + $0xb8] sm:$0xff]
            %v1933 = vld [vmem:[%s1908 + $0xc0] sm:$0xff]
            %v1934 = vld [vmem:[%s1908 + $0xc8] sm:$0xff]
            %v1935 = vld [vmem:[%s1908 + $0xd0] sm:$0xff]
            %v1936 = vld [vmem:[%s1908 + $0xd8] sm:$0xff]
            %v1937 = vld [vmem:[%s1908 + $0xe0] sm:$0xff]
            %v1938 = vld [vmem:[%s1908 + $0xe8] sm:$0xff]
            %v1939 = vld [vmem:[%s1908 + $0xf0] sm:$0xff]
            %v1940 = vld [vmem:[%s1908 + $0xf8] sm:$0xff]
            %s1941 = scalar_lea.vmem %s287, 4
            %v1942 = vld [vmem:[%s1941] sm:$0x3]
            %v1944 = vlaneseq
            %v1945 = vshrl.u32 %v1944, 7
            %v1946 = vsub.s32 0, %v1945
            %v1947 = vrot.slane %v1942, %v1946
            %v1948 = vlaneseq
            %v1949 = vshrl.u32 %v1948, 7
            %v1950 = vsub.s32 1, %v1949
            %v1951 = vrot.slane %v1942, %v1950
            %1954 = vmatprep.subr.mxu0 %v1910
            %1955 = vmatpush1.msra.mxu0 %v1909
            %1956 = vmatprep.subr.mxu0 %v1912
            %1957 = vmatpush1.msra.mxu0 %v1911
            %1958 = vmatprep.subr.mxu0 %v1914
            %1959 = vmatpush1.msra.mxu0 %v1913
            %1960 = vmatprep.subr.mxu0 %v1916
            %1961 = vmatpush1.msra.mxu0 %v1915
            %1962 = vmatprep.subr.mxu0 %v1918
            %1963 = vmatpush1.msra.mxu0 %v1917
            %1964 = vmatprep.subr.mxu0 %v1920
            %1965 = vmatpush1.msra.mxu0 %v1919
            %1966 = vmatprep.subr.mxu0 %v1922
            %1967 = vmatpush1.msra.mxu0 %v1921
            %1968 = vmatprep.subr.mxu0 %v1924
            %1969 = vmatpush1.msra.mxu0 %v1923
            %1970 = vmatprep.subr.mxu0 %v1926
            %1971 = vmatpush1.msra.mxu0 %v1925
            %1972 = vmatprep.subr.mxu0 %v1928
            %1973 = vmatpush1.msra.mxu0 %v1927
            %1974 = vmatprep.subr.mxu0 %v1930
            %1975 = vmatpush1.msra.mxu0 %v1929
            %1976 = vmatprep.subr.mxu0 %v1932
            %1977 = vmatpush1.msra.mxu0 %v1931
            %1978 = vmatprep.subr.mxu0 %v1934
            %1979 = vmatpush1.msra.mxu0 %v1933
            %1980 = vmatprep.subr.mxu0 %v1936
            %1981 = vmatpush1.msra.mxu0 %v1935
            %1982 = vmatprep.subr.mxu0 %v1938
            %1983 = vmatpush1.msra.mxu0 %v1937
            %1984 = vmatprep.subr.mxu0 %v1940
            %1985 = vmatpush1.msra.mxu0 %v1939
            %1986 = vmatprep.subr.mxu0 0.0
            %1987 = vmatpush1.msra.mxu0 0.0
            %1988 = vmatprep.subr.mxu0 0.0
            %1989 = vmatpush1.msra.mxu0 0.0
            %1990 = vmatprep.subr.mxu0 0.0
            %1991 = vmatpush1.msra.mxu0 0.0
            %1992 = vmatprep.subr.mxu0 0.0
            %1993 = vmatpush1.msra.mxu0 0.0
            %1994 = vmatprep.subr.mxu0 0.0
            %1995 = vmatpush1.msra.mxu0 0.0
            %1996 = vmatprep.subr.mxu0 0.0
            %1997 = vmatpush1.msra.mxu0 0.0
            %1998 = vmatprep.subr.mxu0 0.0
            %1999 = vmatpush1.msra.mxu0 0.0
            %2000 = vmatprep.subr.mxu0 0.0
            %2001 = vmatpush1.msra.mxu0 0.0
            %2002 = vmatprep.subr.mxu0 0.0
            %2003 = vmatpush1.msra.mxu0 0.0
            %2004 = vmatprep.subr.mxu0 0.0
            %2005 = vmatpush1.msra.mxu0 0.0
            %2006 = vmatprep.subr.mxu0 0.0
            %2007 = vmatpush1.msra.mxu0 0.0
            %2008 = vmatprep.subr.mxu0 0.0
            %2009 = vmatpush1.msra.mxu0 0.0
            %2010 = vmatprep.subr.mxu0 0.0
            %2011 = vmatpush1.msra.mxu0 0.0
            %2012 = vmatprep.subr.mxu0 0.0
            %2013 = vmatpush1.msra.mxu0 0.0
            %2014 = vmatprep.subr.mxu0 0.0
            %2015 = vmatpush1.msra.mxu0 0.0
            %2016 = vmatprep.subr.mxu0 0.0
            %2017 = vmatpush1.msra.mxu0 0.0
            %2018 = vmatprep.mubr.f32.mxu0 0.0
            %2019 = vmatmul.mubr.f32.gmra.mrb[0].mxu0 %v291
            %v2020 = vpop.f32.mrb[0].mxu0
            %v2021 = vadd.f32 %v1947, %v2020
            %v2022 = vpop.f32.mrb[0].mxu0
            %v2023 = vadd.f32 %v1951, %v2022
            %2024 = vmatprep.mubr.f32.mxu0 0.0
            %2025 = vmatmul.mubr.f32.gmra.mrb[0].mxu0 %v292
            %v2026 = vpop.f32.mrb[0].mxu0
            %v2027 = vadd.f32 %v1947, %v2026
            %v2028 = vpop.f32.mrb[0].mxu0
            %v2029 = vadd.f32 %v1951, %v2028
            %2030 = vmatprep.mubr.f32.mxu0 0.0
            %2031 = vmatmul.mubr.f32.gmra.mrb[0].mxu0 %v293
            %v2032 = vpop.f32.mrb[0].mxu0
            %v2033 = vadd.f32 %v1947, %v2032
            %v2034 = vpop.f32.mrb[0].mxu0
            %v2035 = vadd.f32 %v1951, %v2034
            %2036 = vmatprep.mubr.f32.mxu0 0.0
            %2037 = vmatmul.mubr.f32.gmra.mrb[0].mxu0 %v294
            %v2038 = vpop.f32.mrb[0].mxu0
            %v2039 = vadd.f32 %v1947, %v2038
            %v2040 = vpop.f32.mrb[0].mxu0
            %v2041 = vadd.f32 %v1951, %v2040
            %2042 = vmatprep.mubr.f32.mxu0 0.0
            %2043 = vmatmul.mubr.f32.gmra.mrb[0].mxu0 %v295
            %v2044 = vpop.f32.mrb[0].mxu0
            %v2045 = vadd.f32 %v1947, %v2044
            %v2046 = vpop.f32.mrb[0].mxu0
            %v2047 = vadd.f32 %v1951, %v2046
            %2048 = vmatprep.mubr.f32.mxu0 0.0
            %2049 = vmatmul.mubr.f32.gmra.mrb[0].mxu0 %v296
            %v2050 = vpop.f32.mrb[0].mxu0
            %v2051 = vadd.f32 %v1947, %v2050
            %v2052 = vpop.f32.mrb[0].mxu0
            %v2053 = vadd.f32 %v1951, %v2052
            %2054 = vmatprep.mubr.f32.mxu0 0.0
            %2055 = vmatmul.mubr.f32.gmra.mrb[0].mxu0 %v297
            %v2056 = vpop.f32.mrb[0].mxu0
            %v2057 = vadd.f32 %v1947, %v2056
            %v2058 = vpop.f32.mrb[0].mxu0
            %v2059 = vadd.f32 %v1951, %v2058
            %2060 = vmatprep.mubr.f32.mxu0 0.0
            %2061 = vmatmul.mubr.f32.gmra.mrb[0].mxu0 %v298
            %v2062 = vpop.f32.mrb[0].mxu0
            %v2063 = vadd.f32 %v1947, %v2062
            %v2064 = vpop.f32.mrb[0].mxu0
            %v2065 = vadd.f32 %v1951, %v2064
            %2066 = vmatprep.mubr.f32.mxu0 0.0
            %2067 = vmatmul.mubr.f32.gmra.mrb[0].mxu0 %v299
            %v2068 = vpop.f32.mrb[0].mxu0
            %v2069 = vadd.f32 %v1947, %v2068
            %v2070 = vpop.f32.mrb[0].mxu0
            %v2071 = vadd.f32 %v1951, %v2070
            %2072 = vmatprep.mubr.f32.mxu0 0.0
            %2073 = vmatmul.mubr.f32.gmra.mrb[0].mxu0 %v300
            %v2074 = vpop.f32.mrb[0].mxu0
            %v2075 = vadd.f32 %v1947, %v2074
            %v2076 = vpop.f32.mrb[0].mxu0
            %v2077 = vadd.f32 %v1951, %v2076
            %2078 = vmatprep.mubr.f32.mxu0 0.0
            %2079 = vmatmul.mubr.f32.gmra.mrb[0].mxu0 %v301
            %v2080 = vpop.f32.mrb[0].mxu0
            %v2081 = vadd.f32 %v1947, %v2080
            %v2082 = vpop.f32.mrb[0].mxu0
            %v2083 = vadd.f32 %v1951, %v2082
            %2084 = vmatprep.mubr.f32.mxu0 0.0
            %2085 = vmatmul.mubr.f32.gmra.mrb[0].mxu0 %v302
            %v2086 = vpop.f32.mrb[0].mxu0
            %v2087 = vadd.f32 %v1947, %v2086
            %v2088 = vpop.f32.mrb[0].mxu0
            %v2089 = vadd.f32 %v1951, %v2088
            %2090 = vmatprep.mubr.f32.mxu0 0.0
            %2091 = vmatmul.mubr.f32.gmra.mrb[0].mxu0 %v303
            %v2092 = vpop.f32.mrb[0].mxu0
            %v2093 = vadd.f32 %v1947, %v2092
            %v2094 = vpop.f32.mrb[0].mxu0
            %v2095 = vadd.f32 %v1951, %v2094
            %2096 = vmatprep.mubr.f32.mxu0 0.0
            %2097 = vmatmul.mubr.f32.gmra.mrb[0].mxu0 %v304
            %v2098 = vpop.f32.mrb[0].mxu0
            %v2099 = vadd.f32 %v1947, %v2098
            %v2100 = vpop.f32.mrb[0].mxu0
            %v2101 = vadd.f32 %v1951, %v2100
            %2102 = vmatprep.mubr.f32.mxu0 0.0
            %2103 = vmatmul.mubr.f32.gmra.mrb[0].mxu0 %v305
            %v2104 = vpop.f32.mrb[0].mxu0
            %v2105 = vadd.f32 %v1947, %v2104
            %v2106 = vpop.f32.mrb[0].mxu0
            %v2107 = vadd.f32 %v1951, %v2106
            %2108 = vmatprep.mubr.f32.mxu0 0.0
            %2109 = vmatmul.mubr.f32.gmra.mrb[0].mxu0 %v306
            %v2110 = vpop.f32.mrb[0].mxu0
            %v2111 = vadd.f32 %v1947, %v2110
            %v2112 = vpop.f32.mrb[0].mxu0
            %v2113 = vadd.f32 %v1951, %v2112
            %2114 = vdwg.mxu0
            %vm2115 = vcmp.eq.s32.totalorder %v1039, 2
            %vm2116 = vcmp.eq.s32.totalorder %v1040, 2
            %vm2117 = vcmp.eq.s32.totalorder %v1041, 2
            %vm2118 = vcmp.eq.s32.totalorder %v1042, 2
            %vm2119 = vcmp.eq.s32.totalorder %v1043, 2
            %vm2120 = vcmp.eq.s32.totalorder %v1044, 2
            %vm2121 = vcmp.eq.s32.totalorder %v1045, 2
            %vm2122 = vcmp.eq.s32.totalorder %v1046, 2
            %vm2123 = vcmp.eq.s32.totalorder %v1047, 2
            %vm2124 = vcmp.eq.s32.totalorder %v1048, 2
            %vm2125 = vcmp.eq.s32.totalorder %v1049, 2
            %vm2126 = vcmp.eq.s32.totalorder %v1050, 2
            %vm2127 = vcmp.eq.s32.totalorder %v1051, 2
            %vm2128 = vcmp.eq.s32.totalorder %v1052, 2
            %vm2129 = vcmp.eq.s32.totalorder %v1053, 2
            %vm2130 = vcmp.eq.s32.totalorder %v1054, 2
            %v2131 = vld [vmem:[#allocation2] sm:$0xff]
            %v2132 = vld [vmem:[#allocation2 + $0x8] sm:$0xff]
            %v2133 = vld [vmem:[#allocation2 + $0x10] sm:$0xff]
            %v2134 = vld [vmem:[#allocation2 + $0x18] sm:$0xff]
            %v2135 = vld [vmem:[#allocation2 + $0x20] sm:$0xff]
            %v2136 = vld [vmem:[#allocation2 + $0x28] sm:$0xff]
            %v2137 = vld [vmem:[#allocation2 + $0x30] sm:$0xff]
            %v2138 = vld [vmem:[#allocation2 + $0x38] sm:$0xff]
            %v2139 = vld [vmem:[#allocation2 + $0x40] sm:$0xff]
            %v2140 = vld [vmem:[#allocation2 + $0x48] sm:$0xff]
            %v2141 = vld [vmem:[#allocation2 + $0x50] sm:$0xff]
            %v2142 = vld [vmem:[#allocation2 + $0x58] sm:$0xff]
            %v2143 = vld [vmem:[#allocation2 + $0x60] sm:$0xff]
            %v2144 = vld [vmem:[#allocation2 + $0x68] sm:$0xff]
            %v2145 = vld [vmem:[#allocation2 + $0x70] sm:$0xff]
            %v2146 = vld [vmem:[#allocation2 + $0x78] sm:$0xff]
            %v2147 = vld [vmem:[#allocation2 + $0x80] sm:$0xff]
            %v2148 = vld [vmem:[#allocation2 + $0x88] sm:$0xff]
            %v2149 = vld [vmem:[#allocation2 + $0x90] sm:$0xff]
            %v2150 = vld [vmem:[#allocation2 + $0x98] sm:$0xff]
            %v2151 = vld [vmem:[#allocation2 + $0xa0] sm:$0xff]
            %v2152 = vld [vmem:[#allocation2 + $0xa8] sm:$0xff]
            %v2153 = vld [vmem:[#allocation2 + $0xb0] sm:$0xff]
            %v2154 = vld [vmem:[#allocation2 + $0xb8] sm:$0xff]
            %v2155 = vld [vmem:[#allocation2 + $0xc0] sm:$0xff]
            %v2156 = vld [vmem:[#allocation2 + $0xc8] sm:$0xff]
            %v2157 = vld [vmem:[#allocation2 + $0xd0] sm:$0xff]
            %v2158 = vld [vmem:[#allocation2 + $0xd8] sm:$0xff]
            %v2159 = vld [vmem:[#allocation2 + $0xe0] sm:$0xff]
            %v2160 = vld [vmem:[#allocation2 + $0xe8] sm:$0xff]
            %v2161 = vld [vmem:[#allocation2 + $0xf0] sm:$0xff]
            %v2162 = vld [vmem:[#allocation2 + $0xf8] sm:$0xff]
            %v2163 = vsel %vm2115, 1, 0
            %v2164 = vsel %vm2116, 1, 0
            %v2165 = vsel %vm2117, 1, 0
            %v2166 = vsel %vm2118, 1, 0
            %v2167 = vsel %vm2119, 1, 0
            %v2168 = vsel %vm2120, 1, 0
            %v2169 = vsel %vm2121, 1, 0
            %v2170 = vsel %vm2122, 1, 0
            %v2171 = vsel %vm2123, 1, 0
            %v2172 = vsel %vm2124, 1, 0
            %v2173 = vsel %vm2125, 1, 0
            %v2174 = vsel %vm2126, 1, 0
            %v2175 = vsel %vm2127, 1, 0
            %v2176 = vsel %vm2128, 1, 0
            %v2177 = vsel %vm2129, 1, 0
            %v2178 = vsel %vm2130, 1, 0
            %2179 = vset.pattern.permute.xlu0 0
            %2180 = vperm.xlu0 %2179, %v2163
            %v2181 = vpop.permute.xlu0 %2180
            %2182 = vset.pattern.permute.xlu0 0
            %2183 = vperm.xlu0 %2182, %v2164
            %v2184 = vpop.permute.xlu0 %2183
            %2185 = vset.pattern.permute.xlu0 0
            %2186 = vperm.xlu0 %2185, %v2165
            %v2187 = vpop.permute.xlu0 %2186
            %2188 = vset.pattern.permute.xlu0 0
            %2189 = vperm.xlu0 %2188, %v2166
            %v2190 = vpop.permute.xlu0 %2189
            %2191 = vset.pattern.permute.xlu0 0
            %2192 = vperm.xlu0 %2191, %v2167
            %v2193 = vpop.permute.xlu0 %2192
            %2194 = vset.pattern.permute.xlu0 0
            %2195 = vperm.xlu0 %2194, %v2168
            %v2196 = vpop.permute.xlu0 %2195
            %2197 = vset.pattern.permute.xlu0 0
            %2198 = vperm.xlu0 %2197, %v2169
            %v2199 = vpop.permute.xlu0 %2198
            %2200 = vset.pattern.permute.xlu0 0
            %2201 = vperm.xlu0 %2200, %v2170
            %v2202 = vpop.permute.xlu0 %2201
            %2203 = vset.pattern.permute.xlu0 0
            %2204 = vperm.xlu0 %2203, %v2171
            %v2205 = vpop.permute.xlu0 %2204
            %2206 = vset.pattern.permute.xlu0 0
            %2207 = vperm.xlu0 %2206, %v2172
            %v2208 = vpop.permute.xlu0 %2207
            %2209 = vset.pattern.permute.xlu0 0
            %2210 = vperm.xlu0 %2209, %v2173
            %v2211 = vpop.permute.xlu0 %2210
            %2212 = vset.pattern.permute.xlu0 0
            %2213 = vperm.xlu0 %2212, %v2174
            %v2214 = vpop.permute.xlu0 %2213
            %2215 = vset.pattern.permute.xlu0 0
            %2216 = vperm.xlu0 %2215, %v2175
            %v2217 = vpop.permute.xlu0 %2216
            %2218 = vset.pattern.permute.xlu0 0
            %2219 = vperm.xlu0 %2218, %v2176
            %v2220 = vpop.permute.xlu0 %2219
            %2221 = vset.pattern.permute.xlu0 0
            %2222 = vperm.xlu0 %2221, %v2177
            %v2223 = vpop.permute.xlu0 %2222
            %2224 = vset.pattern.permute.xlu0 0
            %2225 = vperm.xlu0 %2224, %v2178
            %v2226 = vpop.permute.xlu0 %2225
            %vm2227 = vcmp.eq.s32.totalorder %v2181, 1
            %vm2228 = vcmp.eq.s32.totalorder %v2184, 1
            %vm2229 = vcmp.eq.s32.totalorder %v2187, 1
            %vm2230 = vcmp.eq.s32.totalorder %v2190, 1
            %vm2231 = vcmp.eq.s32.totalorder %v2193, 1
            %vm2232 = vcmp.eq.s32.totalorder %v2196, 1
            %vm2233 = vcmp.eq.s32.totalorder %v2199, 1
            %vm2234 = vcmp.eq.s32.totalorder %v2202, 1
            %vm2235 = vcmp.eq.s32.totalorder %v2205, 1
            %vm2236 = vcmp.eq.s32.totalorder %v2208, 1
            %vm2237 = vcmp.eq.s32.totalorder %v2211, 1
            %vm2238 = vcmp.eq.s32.totalorder %v2214, 1
            %vm2239 = vcmp.eq.s32.totalorder %v2217, 1
            %vm2240 = vcmp.eq.s32.totalorder %v2220, 1
            %vm2241 = vcmp.eq.s32.totalorder %v2223, 1
            %vm2242 = vcmp.eq.s32.totalorder %v2226, 1
            %v2243 = vsel %vm2227, %v2021, %v2131
            %v2244 = vsel %vm2227, %v2023, %v2132
            %v2245 = vsel %vm2228, %v2027, %v2133
            %v2246 = vsel %vm2228, %v2029, %v2134
            %v2247 = vsel %vm2229, %v2033, %v2135
            %v2248 = vsel %vm2229, %v2035, %v2136
            %v2249 = vsel %vm2230, %v2039, %v2137
            %v2250 = vsel %vm2230, %v2041, %v2138
            %v2251 = vsel %vm2231, %v2045, %v2139
            %v2252 = vsel %vm2231, %v2047, %v2140
            %v2253 = vsel %vm2232, %v2051, %v2141
            %v2254 = vsel %vm2232, %v2053, %v2142
            %v2255 = vsel %vm2233, %v2057, %v2143
            %v2256 = vsel %vm2233, %v2059, %v2144
            %v2257 = vsel %vm2234, %v2063, %v2145
            %v2258 = vsel %vm2234, %v2065, %v2146
            %v2259 = vsel %vm2235, %v2069, %v2147
            %v2260 = vsel %vm2235, %v2071, %v2148
            %v2261 = vsel %vm2236, %v2075, %v2149
            %v2262 = vsel %vm2236, %v2077, %v2150
            %v2263 = vsel %vm2237, %v2081, %v2151
            %v2264 = vsel %vm2237, %v2083, %v2152
            %v2265 = vsel %vm2238, %v2087, %v2153
            %v2266 = vsel %vm2238, %v2089, %v2154
            %v2267 = vsel %vm2239, %v2093, %v2155
            %v2268 = vsel %vm2239, %v2095, %v2156
            %v2269 = vsel %vm2240, %v2099, %v2157
            %v2270 = vsel %vm2240, %v2101, %v2158
            %v2271 = vsel %vm2241, %v2105, %v2159
            %v2272 = vsel %vm2241, %v2107, %v2160
            %v2273 = vsel %vm2242, %v2111, %v2161
            %v2274 = vsel %vm2242, %v2113, %v2162
            %2275 = vst [vmem:[#allocation2] sm:$0xff] %v2243
            %2276 = vst [vmem:[#allocation2 + $0x8] sm:$0xff] %v2244
            %2277 = vst [vmem:[#allocation2 + $0x10] sm:$0xff] %v2245
            %2278 = vst [vmem:[#allocation2 + $0x18] sm:$0xff] %v2246
            %2279 = vst [vmem:[#allocation2 + $0x20] sm:$0xff] %v2247
            %2280 = vst [vmem:[#allocation2 + $0x28] sm:$0xff] %v2248
            %2281 = vst [vmem:[#allocation2 + $0x30] sm:$0xff] %v2249
            %2282 = vst [vmem:[#allocation2 + $0x38] sm:$0xff] %v2250
            %2283 = vst [vmem:[#allocation2 + $0x40] sm:$0xff] %v2251
            %2284 = vst [vmem:[#allocation2 + $0x48] sm:$0xff] %v2252
            %2285 = vst [vmem:[#allocation2 + $0x50] sm:$0xff] %v2253
            %2286 = vst [vmem:[#allocation2 + $0x58] sm:$0xff] %v2254
            %2287 = vst [vmem:[#allocation2 + $0x60] sm:$0xff] %v2255
            %2288 = vst [vmem:[#allocation2 + $0x68] sm:$0xff] %v2256
            %2289 = vst [vmem:[#allocation2 + $0x70] sm:$0xff] %v2257
            %2290 = vst [vmem:[#allocation2 + $0x78] sm:$0xff] %v2258
            %2291 = vst [vmem:[#allocation2 + $0x80] sm:$0xff] %v2259
            %2292 = vst [vmem:[#allocation2 + $0x88] sm:$0xff] %v2260
            %2293 = vst [vmem:[#allocation2 + $0x90] sm:$0xff] %v2261
            %2294 = vst [vmem:[#allocation2 + $0x98] sm:$0xff] %v2262
            %2295 = vst [vmem:[#allocation2 + $0xa0] sm:$0xff] %v2263
            %2296 = vst [vmem:[#allocation2 + $0xa8] sm:$0xff] %v2264
            %2297 = vst [vmem:[#allocation2 + $0xb0] sm:$0xff] %v2265
            %2298 = vst [vmem:[#allocation2 + $0xb8] sm:$0xff] %v2266
            %2299 = vst [vmem:[#allocation2 + $0xc0] sm:$0xff] %v2267
            %2300 = vst [vmem:[#allocation2 + $0xc8] sm:$0xff] %v2268
            %2301 = vst [vmem:[#allocation2 + $0xd0] sm:$0xff] %v2269
            %2302 = vst [vmem:[#allocation2 + $0xd8] sm:$0xff] %v2270
            %2303 = vst [vmem:[#allocation2 + $0xe0] sm:$0xff] %v2271
            %2304 = vst [vmem:[#allocation2 + $0xe8] sm:$0xff] %v2272
            %2305 = vst [vmem:[#allocation2 + $0xf0] sm:$0xff] %v2273
            %2306 = vst [vmem:[#allocation2 + $0xf8] sm:$0xff] %v2274
          $region68: #{tpu_custom_call.1} parent=55 // pred_fallthru
            _
          %v2307 = vld [vmem:[#allocation2] sm:$0xff]
          %v2308 = vld [vmem:[#allocation2 + $0x8] sm:$0xff]
          %v2309 = vld [vmem:[#allocation2 + $0x10] sm:$0xff]
          %v2310 = vld [vmem:[#allocation2 + $0x18] sm:$0xff]
          %v2311 = vld [vmem:[#allocation2 + $0x20] sm:$0xff]
          %v2312 = vld [vmem:[#allocation2 + $0x28] sm:$0xff]
          %v2313 = vld [vmem:[#allocation2 + $0x30] sm:$0xff]
          %v2314 = vld [vmem:[#allocation2 + $0x38] sm:$0xff]
          %v2315 = vld [vmem:[#allocation2 + $0x40] sm:$0xff]
          %v2316 = vld [vmem:[#allocation2 + $0x48] sm:$0xff]
          %v2317 = vld [vmem:[#allocation2 + $0x50] sm:$0xff]
          %v2318 = vld [vmem:[#allocation2 + $0x58] sm:$0xff]
          %v2319 = vld [vmem:[#allocation2 + $0x60] sm:$0xff]
          %v2320 = vld [vmem:[#allocation2 + $0x68] sm:$0xff]
          %v2321 = vld [vmem:[#allocation2 + $0x70] sm:$0xff]
          %v2322 = vld [vmem:[#allocation2 + $0x78] sm:$0xff]
          %v2323 = vld [vmem:[#allocation2 + $0x80] sm:$0xff]
          %v2324 = vld [vmem:[#allocation2 + $0x88] sm:$0xff]
          %v2325 = vld [vmem:[#allocation2 + $0x90] sm:$0xff]
          %v2326 = vld [vmem:[#allocation2 + $0x98] sm:$0xff]
          %v2327 = vld [vmem:[#allocation2 + $0xa0] sm:$0xff]
          %v2328 = vld [vmem:[#allocation2 + $0xa8] sm:$0xff]
          %v2329 = vld [vmem:[#allocation2 + $0xb0] sm:$0xff]
          %v2330 = vld [vmem:[#allocation2 + $0xb8] sm:$0xff]
          %v2331 = vld [vmem:[#allocation2 + $0xc0] sm:$0xff]
          %v2332 = vld [vmem:[#allocation2 + $0xc8] sm:$0xff]
          %v2333 = vld [vmem:[#allocation2 + $0xd0] sm:$0xff]
          %v2334 = vld [vmem:[#allocation2 + $0xd8] sm:$0xff]
          %v2335 = vld [vmem:[#allocation2 + $0xe0] sm:$0xff]
          %v2336 = vld [vmem:[#allocation2 + $0xe8] sm:$0xff]
          %v2337 = vld [vmem:[#allocation2 + $0xf0] sm:$0xff]
          %v2338 = vld [vmem:[#allocation2 + $0xf8] sm:$0xff]
          %2339 = vst [vmem:[%s270] sm:$0xff] %v2307
          %2340 = vst [vmem:[%s270 + $0x8] sm:$0xff] %v2308
          %2341 = vst [vmem:[%s270 + $0x10] sm:$0xff] %v2309
          %2342 = vst [vmem:[%s270 + $0x18] sm:$0xff] %v2310
          %2343 = vst [vmem:[%s270 + $0x20] sm:$0xff] %v2311
          %2344 = vst [vmem:[%s270 + $0x28] sm:$0xff] %v2312
          %2345 = vst [vmem:[%s270 + $0x30] sm:$0xff] %v2313
          %2346 = vst [vmem:[%s270 + $0x38] sm:$0xff] %v2314
          %2347 = vst [vmem:[%s270 + $0x40] sm:$0xff] %v2315
          %2348 = vst [vmem:[%s270 + $0x48] sm:$0xff] %v2316
          %2349 = vst [vmem:[%s270 + $0x50] sm:$0xff] %v2317
          %2350 = vst [vmem:[%s270 + $0x58] sm:$0xff] %v2318
          %2351 = vst [vmem:[%s270 + $0x60] sm:$0xff] %v2319
          %2352 = vst [vmem:[%s270 + $0x68] sm:$0xff] %v2320
          %2353 = vst [vmem:[%s270 + $0x70] sm:$0xff] %v2321
          %2354 = vst [vmem:[%s270 + $0x78] sm:$0xff] %v2322
          %2355 = vst [vmem:[%s270 + $0x80] sm:$0xff] %v2323
          %2356 = vst [vmem:[%s270 + $0x88] sm:$0xff] %v2324
          %2357 = vst [vmem:[%s270 + $0x90] sm:$0xff] %v2325
          %2358 = vst [vmem:[%s270 + $0x98] sm:$0xff] %v2326
          %2359 = vst [vmem:[%s270 + $0xa0] sm:$0xff] %v2327
          %2360 = vst [vmem:[%s270 + $0xa8] sm:$0xff] %v2328
          %2361 = vst [vmem:[%s270 + $0xb0] sm:$0xff] %v2329
          %2362 = vst [vmem:[%s270 + $0xb8] sm:$0xff] %v2330
          %2363 = vst [vmem:[%s270 + $0xc0] sm:$0xff] %v2331
          %2364 = vst [vmem:[%s270 + $0xc8] sm:$0xff] %v2332
          %2365 = vst [vmem:[%s270 + $0xd0] sm:$0xff] %v2333
          %2366 = vst [vmem:[%s270 + $0xd8] sm:$0xff] %v2334
          %2367 = vst [vmem:[%s270 + $0xe0] sm:$0xff] %v2335
          %2368 = vst [vmem:[%s270 + $0xe8] sm:$0xff] %v2336
          %2369 = vst [vmem:[%s270 + $0xf0] sm:$0xff] %v2337
          %2370 = vst [vmem:[%s270 + $0xf8] sm:$0xff] %v2338
        $region56: #{tpu_custom_call.1} parent=35 // pred_fallthru
          _
        %s2371 = sand.u32 %s157, 1
        %s2372 = scalar_lea.sflag [#allocation8], %s2371
        %s2373 = sand.u32 %s157, 1
        %s2374 = smul.addr %s2373, 256
        %s2375 = scalar_lea.vmem [#allocation9], %s2374
        // Predicated region
        $region69: #{tpu_custom_call.1} parent=35 // pred_check
          %p2376 = pneg %p167
        $region70: #{tpu_custom_call.1} parent=35 // pred_check_branch
          %2378 = sbr.rel (%p2376) target = $region72
        $region71: #{tpu_custom_call.1} parent=35 // pred_region
          %s2379 = smul.u32 16, %s36
          %s2380 = smul.u32 2, %s35
          %s2382 = ssub.s32 4096, 4096
          %2383 = vsyncadd %s2372, %s2382
          %s2384 = smul.addr %s2379, 2
          %s2385 = sadd.s32 %s2380, %s2384
          %s2386 = smul.addr %s2385, 128
          %s2387 = scalar_lea.hbm %s6, %s2386
          %s2388 = sshll.u32 %s2375, 4
          %s2389 = int_to_ptr.vmem [resolvable:$true] %s2388
          %2394 = dma.vmem_to_hbm [thread:$0]  %s2389, 4096, %s2387, %s2372, 256, 256, 16
        $region72: #{tpu_custom_call.1} parent=35 // pred_fallthru
          _
      $region36: #{tpu_custom_call.1} parent=5 // pred_fallthru
        _
      %p2395 = scmp.le.s32.totalorder 2, %s26
      // Predicated region
      $region73: #{tpu_custom_call.1} parent=5 // pred_check
        %p2396 = pneg %p2395
      $region74: #{tpu_custom_call.1} parent=5 // pred_check_branch
        %2398 = sbr.rel (%p2396) target = $region76
      $region75: #{tpu_custom_call.1} parent=5 // pred_region
        %s2399 = ssub.s32 %s26, 2
        // Predicated region
        $region77: #{tpu_custom_call.1} parent=75 // pred_check
          %p2400 = pneg %p173
        $region78: #{tpu_custom_call.1} parent=75 // pred_check_branch
          %2402 = sbr.rel (%p2400) target = $region80
        $region79: #{tpu_custom_call.1} parent=75 // pred_region
          %s2403 = sand.u32 %s158, 1
          %s2404 = scalar_lea.sflag [#allocation8], %s2403
          %s2405 = sand.u32 %s158, 1
          %s2406 = smul.addr %s2405, 256
          %s2407 = scalar_lea.vmem [#allocation9], %s2406
          %2408 = dma.done %s2404, 4096
        $region80: #{tpu_custom_call.1} parent=75 // pred_fallthru
          _
      $region76: #{tpu_custom_call.1} parent=5 // pred_fallthru
        _
    $region6: #{tpu_custom_call.1} parent=1 // loop_footer
      %s30 = sadd.s32 1, %s26
    $region7: #{tpu_custom_call.1} parent=1 // loop_footer_branch
      %25 = sbr.rel target = $region3
    $region8: #{tpu_custom_call.1} parent=1 // loop_exit
      _
    %2409 = vsyncpa [#allocation7], 1
    %s2410 = scalar_lea.sflag [#allocation7], 1
    %2411 = vsyncpa %s2410, 1
    %2412 = vsyncpa [#allocation8], 1
    %s2413 = scalar_lea.sflag [#allocation8], 1
    %2414 = vsyncpa %s2413, 1

</llo_original>
